<compile_context>
chip_gen: v6e
topology: v6e:2x2x1
jax: 0.10.0
libtpu: 0.0.40
codegen_flags: <defaults>
</compile_context>

<pallas_src>
import math
import numpy as np
import jax
import jax.numpy as jnp
from jax.experimental import pallas as pl
from jax.experimental.pallas import tpu as pltpu


_LANE = 128


def _round_up(x, m):
    return ((x + m - 1) // m) * m


def make_dilations(layers, blocks, kernel_size):
    dilations = []
    receptive_field = 1
    init_dilation = 1
    for _ in range(blocks):
        additional_scope = kernel_size - 1
        new_dilation = 1
        for _ in range(layers):
            dilations.append((new_dilation, init_dilation))
            receptive_field += additional_scope
            additional_scope *= 2
            init_dilation = new_dilation
            new_dilation *= 2
    return dilations, receptive_field


# ----------------------------- fused Pallas kernel -----------------------------

def _make_fused_kernel(dils, t0s, l_out):
    """Builds the fused WaveNet kernel for a static dilation / stream-start
    schedule.  dils[i] = absolute dilation of layer i, t0s[i] = first valid
    original-time position of the residual stream after layer i."""
    nl = len(dils)

    def kernel(x_ref, wstart_ref, wf0_ref, wf1_ref, wg0_ref, wg1_ref,
               wr_ref, wsk_ref, w1_ref, b1_ref, w2_ref, b2_ref, o_ref):
        L = x_ref.shape[1]
        cr = wstart_ref.shape[1]
        cs = wsk_ref.shape[2]

        # start_conv (1x1, no bias): (L, classes) @ (classes, Cr) -> f32 stream.
        x = jnp.dot(x_ref[0], wstart_ref[...],
                    preferred_element_type=jnp.float32)            # (L, Cr) f32

        row_t = jax.lax.broadcasted_iota(jnp.int32, (L, 1), 0)     # time index
        skip = jnp.zeros((l_out, cs), jnp.float32)                 # skip accum

        for i in range(nl):
            d = dils[i]
            tap1 = x                                               # value at t
            # value at t-d; zeros for t-d < 0 (== the reference's pad_start
            # zeros, because positions < t0s[i-1] are already zeroed below).
            tap0 = jnp.concatenate(
                [jnp.zeros((d, cr), jnp.float32), x[:L - d, :]], axis=0)
            t0b = tap0.astype(jnp.bfloat16)
            t1b = tap1.astype(jnp.bfloat16)

            # kernel-2 dilated filter/gate convs as split matmuls (no concats).
            f = (jnp.dot(t0b, wf0_ref[i], preferred_element_type=jnp.float32) +
                 jnp.dot(t1b, wf1_ref[i], preferred_element_type=jnp.float32))
            g = (jnp.dot(t0b, wg0_ref[i], preferred_element_type=jnp.float32) +
                 jnp.dot(t1b, wg1_ref[i], preferred_element_type=jnp.float32))
            gated = jnp.tanh(f) * jax.nn.sigmoid(g)                # (L, Cd) f32
            gb = gated.astype(jnp.bfloat16)

            # skip conv (1x1), only the last output_length positions matter.
            skip = skip + jnp.dot(gb[L - l_out:, :], wsk_ref[i],
                                  preferred_element_type=jnp.float32)

            # residual conv (1x1) + residual add (x' = gated@Wr + x[t]).
            x_new = jnp.dot(gb, wr_ref[i],
                            preferred_element_type=jnp.float32) + tap1
            # Zero positions before this layer's stream start so later layers'
            # "t - d" taps read exactly the reference's padding zeros.
            x = x_new * (row_t >= t0s[i]).astype(jnp.float32)

        # end: relu -> end_conv_1(+bias) -> relu -> end_conv_2(+bias).
        h = jnp.maximum(skip, 0.0)
        h = jnp.dot(h.astype(jnp.bfloat16), w1_ref[...],
                    preferred_element_type=jnp.float32) + b1_ref[...]
        h = jnp.maximum(h, 0.0)
        y = jnp.dot(h.astype(jnp.bfloat16), w2_ref[...],
                    preferred_element_type=jnp.float32) + b2_ref[...]
        o_ref[0] = y                                               # (l_out, ccp)

    return kernel


# ------------------------------- wrapper ---------------------------------------

def wavenet_forward(params, cfg, inp):
    """inp: (N, classes, L) f32 -> (N * output_length, classes) f32,
    rows ordered (n, t) exactly like the PyTorch module."""
    dil_list = [d for d, _ in cfg["dilations"]]
    n, classes, L = inp.shape
    l_out = cfg["output_length"]
    cr = cfg["residual_channels"]
    cd = cfg["dilation_channels"]
    cs = cfg["skip_channels"]
    ce = cfg["end_channels"]
    nl = len(dil_list)

    # Static per-layer stream-start schedule (mirrors dilate()'s pad_start +
    # the kernel-2 conv dropping the first d original-time positions).
    cov = L
    t0s = []
    for d in dil_list:
        cov = d * (-(-cov // d)) - d        # pad coverage up to mult of d, conv drops d
        t0s.append(L - cov)
    assert cov >= l_out, "input too short for output_length"

    # NCL -> channels-last once (cheap layout glue); bf16 matmul operands.
    x_nlc = jnp.transpose(inp, (0, 2, 1)).astype(jnp.bfloat16)     # (N, L, classes)

    ccp = params["end2_w"].shape[1]                                 # lane-dense out
    kernel = _make_fused_kernel(dil_list, t0s, l_out)

    w_args = (params["start_w"], params["wf0"], params["wf1"], params["wg0"],
              params["wg1"], params["wr"], params["wskip"],
              params["end1_w"], params["end1_b"], params["end2_w"],
              params["end2_b"])

    # Derived VMEM budget (v7x: 64 MiB per TensorCore; stay well under it).
    weight_bytes = sum(int(np.prod(w.shape)) * w.dtype.itemsize for w in w_args)
    io_bytes = L * classes * 2 + l_out * ccp * 4
    work_bytes = 8 * L * max(cr, 2 * cd, cs) * 4
    vmem_limit = int(min(max(2 * (weight_bytes + io_bytes) + work_bytes + (4 << 20),
                             32 << 20), 60 << 20))

    flops = n * (2 * L * classes * cr
                 + nl * (4 * 2 * L * cr * cd + 2 * L * cd * cr + 2 * l_out * cd * cs)
                 + 2 * l_out * cs * ce + 2 * l_out * ce * ccp)
    bytes_accessed = int(n * L * classes * 2 + weight_bytes + n * l_out * ccp * 4)

    def resident(shape):
        return pl.BlockSpec(shape, lambda b: (0,) * len(shape))

    out = pl.pallas_call(
        kernel,
        out_shape=jax.ShapeDtypeStruct((n, l_out, ccp), jnp.float32),
        grid=(n,),    # one batch element per step; >=2 steps shard v7x megacore
        in_specs=[pl.BlockSpec((1, L, classes), lambda b: (b, 0, 0))]
                 + [resident(w.shape) for w in w_args],
        out_specs=pl.BlockSpec((1, l_out, ccp), lambda b: (b, 0, 0)),
        compiler_params=pltpu.CompilerParams(
            dimension_semantics=("parallel",),
            vmem_limit_bytes=vmem_limit),
        cost_estimate=pl.CostEstimate(
            flops=int(flops),
            transcendentals=int(2 * n * nl * L * cd),
            bytes_accessed=bytes_accessed),
    )(x_nlc, *w_args)

    return out[:, :, :classes].reshape(n * l_out, classes)


# ------------------------------ parameters -------------------------------------

def init_params(key, cfg, dilations):
    """Deterministic weights.  Returns (raw torch-layout f32 weights for the
    reference check, kernel-ready packed bf16/f32 weights)."""
    Cc = cfg["classes"]
    Cr = cfg["residual_channels"]
    Cd = cfg["dilation_channels"]
    Cs = cfg["skip_channels"]
    Ce = cfg["end_channels"]
    K = cfg["kernel_size"]
    assert K == 2
    nl = len(dilations)
    keys = iter(jax.random.split(key, 3 + 4 * nl))

    def nrm(shape, fan_in):
        w = jax.random.normal(next(keys), shape, jnp.float32) / np.sqrt(fan_in)
        # keep weights exactly bf16-representable so the f32 NumPy reference
        # and the bf16 kernel weights carry identical values.
        return np.asarray(w.astype(jnp.bfloat16).astype(jnp.float32))

    raw = dict(
        w_start=nrm((Cr, Cc, 1), Cc),
        wf=[], wg=[], wres=[], wskip=[],
        w_e1=nrm((Ce, Cs, 1), Cs),
        b_e1=np.full((Ce,), 0.01, np.float32),
        w_e2=nrm((Cc, Ce, 1), Ce),
        b_e2=np.full((Cc,), 0.02, np.float32),
    )
    for _ in dilations:
        raw["wf"].append(nrm((Cd, Cr, K), Cr * K))
        raw["wg"].append(nrm((Cd, Cr, K), Cr * K))
        raw["wres"].append(nrm((Cr, Cd, 1), Cd))
        raw["wskip"].append(nrm((Cs, Cd, 1), Cd))

    ccp = _round_up(Cc, _LANE)
    packed = dict(
        start_w=jnp.asarray(raw["w_start"][:, :, 0].T, jnp.bfloat16),          # (Cc, Cr)
        wf0=jnp.asarray(np.stack([w[:, :, 0].T for w in raw["wf"]]), jnp.bfloat16),
        wf1=jnp.asarray(np.stack([w[:, :, 1].T for w in raw["wf"]]), jnp.bfloat16),
        wg0=jnp.asarray(np.stack([w[:, :, 0].T for w in raw["wg"]]), jnp.bfloat16),
        wg1=jnp.asarray(np.stack([w[:, :, 1].T for w in raw["wg"]]), jnp.bfloat16),
        wr=jnp.asarray(np.stack([w[:, :, 0].T for w in raw["wres"]]), jnp.bfloat16),   # (nl,Cd,Cr)
        wskip=jnp.asarray(np.stack([w[:, :, 0].T for w in raw["wskip"]]), jnp.bfloat16),  # (nl,Cd,Cs)
        end1_w=jnp.asarray(raw["w_e1"][:, :, 0].T, jnp.bfloat16),              # (Cs, Ce)
        end1_b=jnp.asarray(raw["b_e1"].reshape(1, Ce), jnp.float32),
        end2_w=jnp.asarray(np.pad(raw["w_e2"][:, :, 0].T,
                                  ((0, 0), (0, ccp - Cc))), jnp.bfloat16),     # (Ce, ccp)
        end2_b=jnp.asarray(np.pad(raw["b_e2"].reshape(1, Cc),
                                  ((0, 0), (0, ccp - Cc))), jnp.float32),
    )
    return raw, packed


# --------------------------- NumPy reference (spec) -----------------------------

def _reference_forward(raw, cfg, inp_f32):
    """Direct NumPy port of WaveNetModel.forward (wavenet_dilate path)."""
    def conv1x1(x, w):                      # x (n,ci,l), w (co,ci,1)
        return np.einsum("oi,nil->nol", w[:, :, 0], x)

    def conv_k2(x, w):                      # x (n,ci,l), w (co,ci,2)
        return (np.einsum("oi,nil->nol", w[:, :, 0], x[:, :, :-1])
                + np.einsum("oi,nil->nol", w[:, :, 1], x[:, :, 1:]))

    def dilate(x, dilation, init_dilation=1):
        n, c, l = x.shape
        factor = dilation / init_dilation
        if factor == 1:
            return x
        new_l = int(np.ceil(l / factor) * factor)
        if new_l != l:
            x = np.pad(x, ((0, 0), (0, 0), (new_l - l, 0)))
            l = new_l
        l_new = int(math.ceil(l * init_dilation / dilation))
        n_new = int(math.ceil(n * dilation / init_dilation))
        x = np.transpose(x, (1, 2, 0)).reshape(c, l_new, n_new)
        return np.transpose(x, (2, 0, 1))

    x = conv1x1(inp_f32, raw["w_start"])
    skip = None
    for i, (dilation, init_dilation) in enumerate(cfg["dilations"]):
        residual = dilate(x, dilation, init_dilation)
        f = np.tanh(conv_k2(residual, raw["wf"][i]))
        g = 1.0 / (1.0 + np.exp(-conv_k2(residual, raw["wg"][i])))
        x = f * g
        s = x
        if x.shape[2] != 1:
            s = dilate(x, 1, init_dilation=dilation)
        s = conv1x1(s, raw["wskip"][i])
        skip = s if skip is None else s + skip[:, :, -s.shape[2]:]
        x = conv1x1(x, raw["wres"][i]) + residual[:, :, 1:]
    out = np.maximum(skip, 0.0)
    out = np.maximum(conv1x1(out, raw["w_e1"]) + raw["b_e1"][None, :, None], 0.0)
    out = conv1x1(out, raw["w_e2"]) + raw["b_e2"][None, :, None]
    l_out = cfg["output_length"]
    out = out[:, :, -l_out:]
    n = out.shape[0]
    return np.transpose(out, (0, 2, 1)).reshape(n * l_out,
                                                cfg["classes"]).astype(np.float32)


# TODO(synk): generate() / generate_fast() (host-side autoregressive sampling with
# np.random.choice and the DilatedQueue fast-inference path) are not kernel work
# and are not implemented; only the training/forward path is.


if __name__ == "__main__":
    cfg = dict(
        layers=2,
        blocks=2,
        dilation_channels=16,
        residual_channels=16,
        skip_channels=32,
        end_channels=32,
        classes=32,
        output_length=8,
        kernel_size=2,
    )
    dilations, receptive_field = make_dilations(cfg["layers"], cfg["blocks"],
                                                cfg["kernel_size"])
    cfg["dilations"] = dilations

    key = jax.random.PRNGKey(0)
    k_in, k_p = jax.random.split(key)

    N, L = 2, 16   # L >= receptive_field - 1 + output_length
    inp = jax.random.normal(k_in, (N, cfg["classes"], L), dtype=jnp.float32)
    raw, params = init_params(k_p, cfg, dilations)

    fwd = jax.jit(lambda p, x: wavenet_forward(p, cfg, x))
    out = jax.block_until_ready(fwd(params, inp))

    assert out.shape == (N * cfg["output_length"], cfg["classes"]), out.shape
    assert bool(jnp.all(jnp.isfinite(out)))

    # Correctness check against a NumPy port of the PyTorch forward
    # (weights are bf16-representable; input rounded to bf16 like the kernel's).
    inp_ref = np.asarray(jnp.asarray(inp, jnp.bfloat16).astype(jnp.float32))
    ref = _reference_forward(raw, cfg, inp_ref)
    np.testing.assert_allclose(np.asarray(out, np.float32), ref,
                               rtol=5e-2, atol=5e-2)

    print("KERNEL_OK")
</pallas_src>

<mosaic_0001>
module attributes {stable_mosaic.version = 11 : i64} {
  func.func @kernel(%arg0: i32, %arg1: memref<1x16x32xbf16, #tpu.memory_space<vmem>>, %arg2: memref<32x16xbf16, #tpu.memory_space<vmem>>, %arg3: memref<4x16x16xbf16, #tpu.memory_space<vmem>>, %arg4: memref<4x16x16xbf16, #tpu.memory_space<vmem>>, %arg5: memref<4x16x16xbf16, #tpu.memory_space<vmem>>, %arg6: memref<4x16x16xbf16, #tpu.memory_space<vmem>>, %arg7: memref<4x16x16xbf16, #tpu.memory_space<vmem>>, %arg8: memref<4x16x32xbf16, #tpu.memory_space<vmem>>, %arg9: memref<32x32xbf16, #tpu.memory_space<vmem>>, %arg10: memref<1x32xf32, #tpu.memory_space<vmem>>, %arg11: memref<32x128xbf16, #tpu.memory_space<vmem>>, %arg12: memref<1x128xf32, #tpu.memory_space<vmem>>, %arg13: memref<1x8x128xf32, #tpu.memory_space<vmem>>) attributes {dimension_semantics = [#tpu.dimension_semantics<parallel>], iteration_bounds = array<i64: 2>, scalar_prefetch = 0 : i64, scratch_operands = 0 : i64, tpu.core_type = #tpu.core_type<tc>, window_params = [{transform_indices = @transform_0, window_bounds = array<i64: 1, 16, 32>}, {pipeline_mode = #tpu.pipeline_mode<synchronous>, transform_indices = @transform_1, window_bounds = array<i64: 32, 16>}, {pipeline_mode = #tpu.pipeline_mode<synchronous>, transform_indices = @transform_2, window_bounds = array<i64: 4, 16, 16>}, {pipeline_mode = #tpu.pipeline_mode<synchronous>, transform_indices = @transform_3, window_bounds = array<i64: 4, 16, 16>}, {pipeline_mode = #tpu.pipeline_mode<synchronous>, transform_indices = @transform_4, window_bounds = array<i64: 4, 16, 16>}, {pipeline_mode = #tpu.pipeline_mode<synchronous>, transform_indices = @transform_5, window_bounds = array<i64: 4, 16, 16>}, {pipeline_mode = #tpu.pipeline_mode<synchronous>, transform_indices = @transform_6, window_bounds = array<i64: 4, 16, 16>}, {pipeline_mode = #tpu.pipeline_mode<synchronous>, transform_indices = @transform_7, window_bounds = array<i64: 4, 16, 32>}, {pipeline_mode = #tpu.pipeline_mode<synchronous>, transform_indices = @transform_8, window_bounds = array<i64: 32, 32>}, {pipeline_mode = #tpu.pipeline_mode<synchronous>, transform_indices = @transform_9, window_bounds = array<i64: 1, 32>}, {pipeline_mode = #tpu.pipeline_mode<synchronous>, transform_indices = @transform_10, window_bounds = array<i64: 32, 128>}, {pipeline_mode = #tpu.pipeline_mode<synchronous>, transform_indices = @transform_11, window_bounds = array<i64: 1, 128>}, {transform_indices = @transform_12, window_bounds = array<i64: 1, 8, 128>}]} {
    %c0 = arith.constant 0 : index
    %c0_0 = arith.constant 0 : index
    %c0_1 = arith.constant 0 : index
    %0 = vector.load %arg1[%c0, %c0_0, %c0_1] : memref<1x16x32xbf16, #tpu.memory_space<vmem>>, vector<1x16x32xbf16>
    %1 = vector.shape_cast %0 : vector<1x16x32xbf16> to vector<16x32xbf16>
    %c0_2 = arith.constant 0 : index
    %c0_3 = arith.constant 0 : index
    %2 = vector.load %arg2[%c0_2, %c0_3] : memref<32x16xbf16, #tpu.memory_space<vmem>>, vector<32x16xbf16>
    %cst = arith.constant dense<0.000000e+00> : vector<16x16xf32>
    %3 = tpu.matmul %1, %2, %cst {dimension_numbers = #tpu.dot_dimension_numbers<[1], [0], [0], [1], [0, 0, 1, 1], [], []>} : vector<16x32xbf16>, vector<32x16xbf16>, vector<16x16xf32> -> vector<16x16xf32>
    %4 = tpu.iota {dimensions = array<i32: 0>} : vector<16x1xi32>
    %cst_4 = arith.constant 0.000000e+00 : f32
    %5 = vector.broadcast %cst_4 : f32 to vector<8x32xf32>
    %cst_5 = arith.constant 0.000000e+00 : f32
    %6 = vector.broadcast %cst_5 : f32 to vector<1x16xf32>
    %7 = vector.extract_strided_slice %3 {offsets = [0, 0], sizes = [15, 16], strides = [1, 1]} : vector<16x16xf32> to vector<15x16xf32>
    %8 = tpu.concatenate %6, %7 in 0 : vector<1x16xf32>, vector<15x16xf32> -> vector<16x16xf32>
    %9 = arith.truncf %8 : vector<16x16xf32> to vector<16x16xbf16>
    %10 = arith.truncf %3 : vector<16x16xf32> to vector<16x16xbf16>
    %c0_6 = arith.constant 0 : index
    %c0_7 = arith.constant 0 : index
    %c0_8 = arith.constant 0 : index
    %11 = vector.load %arg3[%c0_6, %c0_7, %c0_8] : memref<4x16x16xbf16, #tpu.memory_space<vmem>>, vector<1x16x16xbf16>
    %12 = vector.shape_cast %11 : vector<1x16x16xbf16> to vector<16x16xbf16>
    %cst_9 = arith.constant dense<0.000000e+00> : vector<16x16xf32>
    %13 = tpu.matmul %9, %12, %cst_9 {dimension_numbers = #tpu.dot_dimension_numbers<[1], [0], [0], [1], [0, 0, 1, 1], [], []>} : vector<16x16xbf16>, vector<16x16xbf16>, vector<16x16xf32> -> vector<16x16xf32>
    %c0_10 = arith.constant 0 : index
    %c0_11 = arith.constant 0 : index
    %c0_12 = arith.constant 0 : index
    %14 = vector.load %arg4[%c0_10, %c0_11, %c0_12] : memref<4x16x16xbf16, #tpu.memory_space<vmem>>, vector<1x16x16xbf16>
    %15 = vector.shape_cast %14 : vector<1x16x16xbf16> to vector<16x16xbf16>
    %cst_13 = arith.constant dense<0.000000e+00> : vector<16x16xf32>
    %16 = tpu.matmul %10, %15, %cst_13 {dimension_numbers = #tpu.dot_dimension_numbers<[1], [0], [0], [1], [0, 0, 1, 1], [], []>} : vector<16x16xbf16>, vector<16x16xbf16>, vector<16x16xf32> -> vector<16x16xf32>
    %17 = arith.addf %13, %16 : vector<16x16xf32>
    %c0_14 = arith.constant 0 : index
    %c0_15 = arith.constant 0 : index
    %c0_16 = arith.constant 0 : index
    %18 = vector.load %arg5[%c0_14, %c0_15, %c0_16] : memref<4x16x16xbf16, #tpu.memory_space<vmem>>, vector<1x16x16xbf16>
    %19 = vector.shape_cast %18 : vector<1x16x16xbf16> to vector<16x16xbf16>
    %cst_17 = arith.constant dense<0.000000e+00> : vector<16x16xf32>
    %20 = tpu.matmul %9, %19, %cst_17 {dimension_numbers = #tpu.dot_dimension_numbers<[1], [0], [0], [1], [0, 0, 1, 1], [], []>} : vector<16x16xbf16>, vector<16x16xbf16>, vector<16x16xf32> -> vector<16x16xf32>
    %c0_18 = arith.constant 0 : index
    %c0_19 = arith.constant 0 : index
    %c0_20 = arith.constant 0 : index
    %21 = vector.load %arg6[%c0_18, %c0_19, %c0_20] : memref<4x16x16xbf16, #tpu.memory_space<vmem>>, vector<1x16x16xbf16>
    %22 = vector.shape_cast %21 : vector<1x16x16xbf16> to vector<16x16xbf16>
    %cst_21 = arith.constant dense<0.000000e+00> : vector<16x16xf32>
    %23 = tpu.matmul %10, %22, %cst_21 {dimension_numbers = #tpu.dot_dimension_numbers<[1], [0], [0], [1], [0, 0, 1, 1], [], []>} : vector<16x16xbf16>, vector<16x16xbf16>, vector<16x16xf32> -> vector<16x16xf32>
    %24 = arith.addf %20, %23 : vector<16x16xf32>
    %25 = math.tanh %17 : vector<16x16xf32>
    %26 = arith.negf %24 : vector<16x16xf32>
    %27 = math.exp %26 : vector<16x16xf32>
    %cst_22 = arith.constant 1.000000e+00 : f32
    %28 = vector.broadcast %cst_22 : f32 to vector<16x16xf32>
    %29 = arith.addf %28, %27 : vector<16x16xf32>
    %30 = arith.divf %28, %29 : vector<16x16xf32>
    %31 = arith.mulf %25, %30 : vector<16x16xf32>
    %32 = arith.truncf %31 : vector<16x16xf32> to vector<16x16xbf16>
    %33 = vector.extract_strided_slice %32 {offsets = [8, 0], sizes = [8, 16], strides = [1, 1]} : vector<16x16xbf16> to vector<8x16xbf16>
    %c0_23 = arith.constant 0 : index
    %c0_24 = arith.constant 0 : index
    %c0_25 = arith.constant 0 : index
    %34 = vector.load %arg8[%c0_23, %c0_24, %c0_25] : memref<4x16x32xbf16, #tpu.memory_space<vmem>>, vector<1x16x32xbf16>
    %35 = vector.shape_cast %34 : vector<1x16x32xbf16> to vector<16x32xbf16>
    %cst_26 = arith.constant dense<0.000000e+00> : vector<8x32xf32>
    %36 = tpu.matmul %33, %35, %cst_26 {dimension_numbers = #tpu.dot_dimension_numbers<[1], [0], [0], [1], [0, 0, 1, 1], [], []>} : vector<8x16xbf16>, vector<16x32xbf16>, vector<8x32xf32> -> vector<8x32xf32>
    %37 = arith.addf %5, %36 : vector<8x32xf32>
    %c0_27 = arith.constant 0 : index
    %c0_28 = arith.constant 0 : index
    %c0_29 = arith.constant 0 : index
    %38 = vector.load %arg7[%c0_27, %c0_28, %c0_29] : memref<4x16x16xbf16, #tpu.memory_space<vmem>>, vector<1x16x16xbf16>
    %39 = vector.shape_cast %38 : vector<1x16x16xbf16> to vector<16x16xbf16>
    %cst_30 = arith.constant dense<0.000000e+00> : vector<16x16xf32>
    %40 = tpu.matmul %32, %39, %cst_30 {dimension_numbers = #tpu.dot_dimension_numbers<[1], [0], [0], [1], [0, 0, 1, 1], [], []>} : vector<16x16xbf16>, vector<16x16xbf16>, vector<16x16xf32> -> vector<16x16xf32>
    %41 = arith.addf %40, %3 : vector<16x16xf32>
    %c1_i32 = arith.constant 1 : i32
    %42 = vector.broadcast %c1_i32 : i32 to vector<16x1xi32>
    %43 = arith.cmpi sge, %4, %42 : vector<16x1xi32>
    %44 = arith.extui %43 : vector<16x1xi1> to vector<16x1xi32>
    %45 = arith.sitofp %44 : vector<16x1xi32> to vector<16x1xf32>
    %46 = vector.broadcast %45 : vector<16x1xf32> to vector<16x16xf32>
    %47 = arith.mulf %41, %46 : vector<16x16xf32>
    %cst_31 = arith.constant 0.000000e+00 : f32
    %48 = vector.broadcast %cst_31 : f32 to vector<2x16xf32>
    %49 = vector.extract_strided_slice %47 {offsets = [0, 0], sizes = [14, 16], strides = [1, 1]} : vector<16x16xf32> to vector<14x16xf32>
    %50 = tpu.concatenate %48, %49 in 0 : vector<2x16xf32>, vector<14x16xf32> -> vector<16x16xf32>
    %51 = arith.truncf %50 : vector<16x16xf32> to vector<16x16xbf16>
    %52 = arith.truncf %47 : vector<16x16xf32> to vector<16x16xbf16>
    %c1 = arith.constant 1 : index
    %c0_32 = arith.constant 0 : index
    %c0_33 = arith.constant 0 : index
    %53 = vector.load %arg3[%c1, %c0_32, %c0_33] : memref<4x16x16xbf16, #tpu.memory_space<vmem>>, vector<1x16x16xbf16>
    %54 = vector.shape_cast %53 : vector<1x16x16xbf16> to vector<16x16xbf16>
    %cst_34 = arith.constant dense<0.000000e+00> : vector<16x16xf32>
    %55 = tpu.matmul %51, %54, %cst_34 {dimension_numbers = #tpu.dot_dimension_numbers<[1], [0], [0], [1], [0, 0, 1, 1], [], []>} : vector<16x16xbf16>, vector<16x16xbf16>, vector<16x16xf32> -> vector<16x16xf32>
    %c1_35 = arith.constant 1 : index
    %c0_36 = arith.constant 0 : index
    %c0_37 = arith.constant 0 : index
    %56 = vector.load %arg4[%c1_35, %c0_36, %c0_37] : memref<4x16x16xbf16, #tpu.memory_space<vmem>>, vector<1x16x16xbf16>
    %57 = vector.shape_cast %56 : vector<1x16x16xbf16> to vector<16x16xbf16>
    %cst_38 = arith.constant dense<0.000000e+00> : vector<16x16xf32>
    %58 = tpu.matmul %52, %57, %cst_38 {dimension_numbers = #tpu.dot_dimension_numbers<[1], [0], [0], [1], [0, 0, 1, 1], [], []>} : vector<16x16xbf16>, vector<16x16xbf16>, vector<16x16xf32> -> vector<16x16xf32>
    %59 = arith.addf %55, %58 : vector<16x16xf32>
    %c1_39 = arith.constant 1 : index
    %c0_40 = arith.constant 0 : index
    %c0_41 = arith.constant 0 : index
    %60 = vector.load %arg5[%c1_39, %c0_40, %c0_41] : memref<4x16x16xbf16, #tpu.memory_space<vmem>>, vector<1x16x16xbf16>
    %61 = vector.shape_cast %60 : vector<1x16x16xbf16> to vector<16x16xbf16>
    %cst_42 = arith.constant dense<0.000000e+00> : vector<16x16xf32>
    %62 = tpu.matmul %51, %61, %cst_42 {dimension_numbers = #tpu.dot_dimension_numbers<[1], [0], [0], [1], [0, 0, 1, 1], [], []>} : vector<16x16xbf16>, vector<16x16xbf16>, vector<16x16xf32> -> vector<16x16xf32>
    %c1_43 = arith.constant 1 : index
    %c0_44 = arith.constant 0 : index
    %c0_45 = arith.constant 0 : index
    %63 = vector.load %arg6[%c1_43, %c0_44, %c0_45] : memref<4x16x16xbf16, #tpu.memory_space<vmem>>, vector<1x16x16xbf16>
    %64 = vector.shape_cast %63 : vector<1x16x16xbf16> to vector<16x16xbf16>
    %cst_46 = arith.constant dense<0.000000e+00> : vector<16x16xf32>
    %65 = tpu.matmul %52, %64, %cst_46 {dimension_numbers = #tpu.dot_dimension_numbers<[1], [0], [0], [1], [0, 0, 1, 1], [], []>} : vector<16x16xbf16>, vector<16x16xbf16>, vector<16x16xf32> -> vector<16x16xf32>
    %66 = arith.addf %62, %65 : vector<16x16xf32>
    %67 = math.tanh %59 : vector<16x16xf32>
    %68 = arith.negf %66 : vector<16x16xf32>
    %69 = math.exp %68 : vector<16x16xf32>
    %cst_47 = arith.constant 1.000000e+00 : f32
    %70 = vector.broadcast %cst_47 : f32 to vector<16x16xf32>
    %71 = arith.addf %70, %69 : vector<16x16xf32>
    %72 = arith.divf %70, %71 : vector<16x16xf32>
    %73 = arith.mulf %67, %72 : vector<16x16xf32>
    %74 = arith.truncf %73 : vector<16x16xf32> to vector<16x16xbf16>
    %75 = vector.extract_strided_slice %74 {offsets = [8, 0], sizes = [8, 16], strides = [1, 1]} : vector<16x16xbf16> to vector<8x16xbf16>
    %c1_48 = arith.constant 1 : index
    %c0_49 = arith.constant 0 : index
    %c0_50 = arith.constant 0 : index
    %76 = vector.load %arg8[%c1_48, %c0_49, %c0_50] : memref<4x16x32xbf16, #tpu.memory_space<vmem>>, vector<1x16x32xbf16>
    %77 = vector.shape_cast %76 : vector<1x16x32xbf16> to vector<16x32xbf16>
    %cst_51 = arith.constant dense<0.000000e+00> : vector<8x32xf32>
    %78 = tpu.matmul %75, %77, %cst_51 {dimension_numbers = #tpu.dot_dimension_numbers<[1], [0], [0], [1], [0, 0, 1, 1], [], []>} : vector<8x16xbf16>, vector<16x32xbf16>, vector<8x32xf32> -> vector<8x32xf32>
    %79 = arith.addf %37, %78 : vector<8x32xf32>
    %c1_52 = arith.constant 1 : index
    %c0_53 = arith.constant 0 : index
    %c0_54 = arith.constant 0 : index
    %80 = vector.load %arg7[%c1_52, %c0_53, %c0_54] : memref<4x16x16xbf16, #tpu.memory_space<vmem>>, vector<1x16x16xbf16>
    %81 = vector.shape_cast %80 : vector<1x16x16xbf16> to vector<16x16xbf16>
    %cst_55 = arith.constant dense<0.000000e+00> : vector<16x16xf32>
    %82 = tpu.matmul %74, %81, %cst_55 {dimension_numbers = #tpu.dot_dimension_numbers<[1], [0], [0], [1], [0, 0, 1, 1], [], []>} : vector<16x16xbf16>, vector<16x16xbf16>, vector<16x16xf32> -> vector<16x16xf32>
    %83 = arith.addf %82, %47 : vector<16x16xf32>
    %c2_i32 = arith.constant 2 : i32
    %84 = vector.broadcast %c2_i32 : i32 to vector<16x1xi32>
    %85 = arith.cmpi sge, %4, %84 : vector<16x1xi32>
    %86 = arith.extui %85 : vector<16x1xi1> to vector<16x1xi32>
    %87 = arith.sitofp %86 : vector<16x1xi32> to vector<16x1xf32>
    %88 = vector.broadcast %87 : vector<16x1xf32> to vector<16x16xf32>
    %89 = arith.mulf %83, %88 : vector<16x16xf32>
    %cst_56 = arith.constant 0.000000e+00 : f32
    %90 = vector.broadcast %cst_56 : f32 to vector<1x16xf32>
    %91 = vector.extract_strided_slice %89 {offsets = [0, 0], sizes = [15, 16], strides = [1, 1]} : vector<16x16xf32> to vector<15x16xf32>
    %92 = tpu.concatenate %90, %91 in 0 : vector<1x16xf32>, vector<15x16xf32> -> vector<16x16xf32>
    %93 = arith.truncf %92 : vector<16x16xf32> to vector<16x16xbf16>
    %94 = arith.truncf %89 : vector<16x16xf32> to vector<16x16xbf16>
    %c2 = arith.constant 2 : index
    %c0_57 = arith.constant 0 : index
    %c0_58 = arith.constant 0 : index
    %95 = vector.load %arg3[%c2, %c0_57, %c0_58] : memref<4x16x16xbf16, #tpu.memory_space<vmem>>, vector<1x16x16xbf16>
    %96 = vector.shape_cast %95 : vector<1x16x16xbf16> to vector<16x16xbf16>
    %cst_59 = arith.constant dense<0.000000e+00> : vector<16x16xf32>
    %97 = tpu.matmul %93, %96, %cst_59 {dimension_numbers = #tpu.dot_dimension_numbers<[1], [0], [0], [1], [0, 0, 1, 1], [], []>} : vector<16x16xbf16>, vector<16x16xbf16>, vector<16x16xf32> -> vector<16x16xf32>
    %c2_60 = arith.constant 2 : index
    %c0_61 = arith.constant 0 : index
    %c0_62 = arith.constant 0 : index
    %98 = vector.load %arg4[%c2_60, %c0_61, %c0_62] : memref<4x16x16xbf16, #tpu.memory_space<vmem>>, vector<1x16x16xbf16>
    %99 = vector.shape_cast %98 : vector<1x16x16xbf16> to vector<16x16xbf16>
    %cst_63 = arith.constant dense<0.000000e+00> : vector<16x16xf32>
    %100 = tpu.matmul %94, %99, %cst_63 {dimension_numbers = #tpu.dot_dimension_numbers<[1], [0], [0], [1], [0, 0, 1, 1], [], []>} : vector<16x16xbf16>, vector<16x16xbf16>, vector<16x16xf32> -> vector<16x16xf32>
    %101 = arith.addf %97, %100 : vector<16x16xf32>
    %c2_64 = arith.constant 2 : index
    %c0_65 = arith.constant 0 : index
    %c0_66 = arith.constant 0 : index
    %102 = vector.load %arg5[%c2_64, %c0_65, %c0_66] : memref<4x16x16xbf16, #tpu.memory_space<vmem>>, vector<1x16x16xbf16>
    %103 = vector.shape_cast %102 : vector<1x16x16xbf16> to vector<16x16xbf16>
    %cst_67 = arith.constant dense<0.000000e+00> : vector<16x16xf32>
    %104 = tpu.matmul %93, %103, %cst_67 {dimension_numbers = #tpu.dot_dimension_numbers<[1], [0], [0], [1], [0, 0, 1, 1], [], []>} : vector<16x16xbf16>, vector<16x16xbf16>, vector<16x16xf32> -> vector<16x16xf32>
    %c2_68 = arith.constant 2 : index
    %c0_69 = arith.constant 0 : index
    %c0_70 = arith.constant 0 : index
    %105 = vector.load %arg6[%c2_68, %c0_69, %c0_70] : memref<4x16x16xbf16, #tpu.memory_space<vmem>>, vector<1x16x16xbf16>
    %106 = vector.shape_cast %105 : vector<1x16x16xbf16> to vector<16x16xbf16>
    %cst_71 = arith.constant dense<0.000000e+00> : vector<16x16xf32>
    %107 = tpu.matmul %94, %106, %cst_71 {dimension_numbers = #tpu.dot_dimension_numbers<[1], [0], [0], [1], [0, 0, 1, 1], [], []>} : vector<16x16xbf16>, vector<16x16xbf16>, vector<16x16xf32> -> vector<16x16xf32>
    %108 = arith.addf %104, %107 : vector<16x16xf32>
    %109 = math.tanh %101 : vector<16x16xf32>
    %110 = arith.negf %108 : vector<16x16xf32>
    %111 = math.exp %110 : vector<16x16xf32>
    %cst_72 = arith.constant 1.000000e+00 : f32
    %112 = vector.broadcast %cst_72 : f32 to vector<16x16xf32>
    %113 = arith.addf %112, %111 : vector<16x16xf32>
    %114 = arith.divf %112, %113 : vector<16x16xf32>
    %115 = arith.mulf %109, %114 : vector<16x16xf32>
    %116 = arith.truncf %115 : vector<16x16xf32> to vector<16x16xbf16>
    %117 = vector.extract_strided_slice %116 {offsets = [8, 0], sizes = [8, 16], strides = [1, 1]} : vector<16x16xbf16> to vector<8x16xbf16>
    %c2_73 = arith.constant 2 : index
    %c0_74 = arith.constant 0 : index
    %c0_75 = arith.constant 0 : index
    %118 = vector.load %arg8[%c2_73, %c0_74, %c0_75] : memref<4x16x32xbf16, #tpu.memory_space<vmem>>, vector<1x16x32xbf16>
    %119 = vector.shape_cast %118 : vector<1x16x32xbf16> to vector<16x32xbf16>
    %cst_76 = arith.constant dense<0.000000e+00> : vector<8x32xf32>
    %120 = tpu.matmul %117, %119, %cst_76 {dimension_numbers = #tpu.dot_dimension_numbers<[1], [0], [0], [1], [0, 0, 1, 1], [], []>} : vector<8x16xbf16>, vector<16x32xbf16>, vector<8x32xf32> -> vector<8x32xf32>
    %121 = arith.addf %79, %120 : vector<8x32xf32>
    %c2_77 = arith.constant 2 : index
    %c0_78 = arith.constant 0 : index
    %c0_79 = arith.constant 0 : index
    %122 = vector.load %arg7[%c2_77, %c0_78, %c0_79] : memref<4x16x16xbf16, #tpu.memory_space<vmem>>, vector<1x16x16xbf16>
    %123 = vector.shape_cast %122 : vector<1x16x16xbf16> to vector<16x16xbf16>
    %cst_80 = arith.constant dense<0.000000e+00> : vector<16x16xf32>
    %124 = tpu.matmul %116, %123, %cst_80 {dimension_numbers = #tpu.dot_dimension_numbers<[1], [0], [0], [1], [0, 0, 1, 1], [], []>} : vector<16x16xbf16>, vector<16x16xbf16>, vector<16x16xf32> -> vector<16x16xf32>
    %125 = arith.addf %124, %89 : vector<16x16xf32>
    %c3_i32 = arith.constant 3 : i32
    %126 = vector.broadcast %c3_i32 : i32 to vector<16x1xi32>
    %127 = arith.cmpi sge, %4, %126 : vector<16x1xi32>
    %128 = arith.extui %127 : vector<16x1xi1> to vector<16x1xi32>
    %129 = arith.sitofp %128 : vector<16x1xi32> to vector<16x1xf32>
    %130 = vector.broadcast %129 : vector<16x1xf32> to vector<16x16xf32>
    %131 = arith.mulf %125, %130 : vector<16x16xf32>
    %cst_81 = arith.constant 0.000000e+00 : f32
    %132 = vector.broadcast %cst_81 : f32 to vector<2x16xf32>
    %133 = vector.extract_strided_slice %131 {offsets = [0, 0], sizes = [14, 16], strides = [1, 1]} : vector<16x16xf32> to vector<14x16xf32>
    %134 = tpu.concatenate %132, %133 in 0 : vector<2x16xf32>, vector<14x16xf32> -> vector<16x16xf32>
    %135 = arith.truncf %134 : vector<16x16xf32> to vector<16x16xbf16>
    %136 = arith.truncf %131 : vector<16x16xf32> to vector<16x16xbf16>
    %c3 = arith.constant 3 : index
    %c0_82 = arith.constant 0 : index
    %c0_83 = arith.constant 0 : index
    %137 = vector.load %arg3[%c3, %c0_82, %c0_83] : memref<4x16x16xbf16, #tpu.memory_space<vmem>>, vector<1x16x16xbf16>
    %138 = vector.shape_cast %137 : vector<1x16x16xbf16> to vector<16x16xbf16>
    %cst_84 = arith.constant dense<0.000000e+00> : vector<16x16xf32>
    %139 = tpu.matmul %135, %138, %cst_84 {dimension_numbers = #tpu.dot_dimension_numbers<[1], [0], [0], [1], [0, 0, 1, 1], [], []>} : vector<16x16xbf16>, vector<16x16xbf16>, vector<16x16xf32> -> vector<16x16xf32>
    %c3_85 = arith.constant 3 : index
    %c0_86 = arith.constant 0 : index
    %c0_87 = arith.constant 0 : index
    %140 = vector.load %arg4[%c3_85, %c0_86, %c0_87] : memref<4x16x16xbf16, #tpu.memory_space<vmem>>, vector<1x16x16xbf16>
    %141 = vector.shape_cast %140 : vector<1x16x16xbf16> to vector<16x16xbf16>
    %cst_88 = arith.constant dense<0.000000e+00> : vector<16x16xf32>
    %142 = tpu.matmul %136, %141, %cst_88 {dimension_numbers = #tpu.dot_dimension_numbers<[1], [0], [0], [1], [0, 0, 1, 1], [], []>} : vector<16x16xbf16>, vector<16x16xbf16>, vector<16x16xf32> -> vector<16x16xf32>
    %143 = arith.addf %139, %142 : vector<16x16xf32>
    %c3_89 = arith.constant 3 : index
    %c0_90 = arith.constant 0 : index
    %c0_91 = arith.constant 0 : index
    %144 = vector.load %arg5[%c3_89, %c0_90, %c0_91] : memref<4x16x16xbf16, #tpu.memory_space<vmem>>, vector<1x16x16xbf16>
    %145 = vector.shape_cast %144 : vector<1x16x16xbf16> to vector<16x16xbf16>
    %cst_92 = arith.constant dense<0.000000e+00> : vector<16x16xf32>
    %146 = tpu.matmul %135, %145, %cst_92 {dimension_numbers = #tpu.dot_dimension_numbers<[1], [0], [0], [1], [0, 0, 1, 1], [], []>} : vector<16x16xbf16>, vector<16x16xbf16>, vector<16x16xf32> -> vector<16x16xf32>
    %c3_93 = arith.constant 3 : index
    %c0_94 = arith.constant 0 : index
    %c0_95 = arith.constant 0 : index
    %147 = vector.load %arg6[%c3_93, %c0_94, %c0_95] : memref<4x16x16xbf16, #tpu.memory_space<vmem>>, vector<1x16x16xbf16>
    %148 = vector.shape_cast %147 : vector<1x16x16xbf16> to vector<16x16xbf16>
    %cst_96 = arith.constant dense<0.000000e+00> : vector<16x16xf32>
    %149 = tpu.matmul %136, %148, %cst_96 {dimension_numbers = #tpu.dot_dimension_numbers<[1], [0], [0], [1], [0, 0, 1, 1], [], []>} : vector<16x16xbf16>, vector<16x16xbf16>, vector<16x16xf32> -> vector<16x16xf32>
    %150 = arith.addf %146, %149 : vector<16x16xf32>
    %151 = math.tanh %143 : vector<16x16xf32>
    %152 = arith.negf %150 : vector<16x16xf32>
    %153 = math.exp %152 : vector<16x16xf32>
    %cst_97 = arith.constant 1.000000e+00 : f32
    %154 = vector.broadcast %cst_97 : f32 to vector<16x16xf32>
    %155 = arith.addf %154, %153 : vector<16x16xf32>
    %156 = arith.divf %154, %155 : vector<16x16xf32>
    %157 = arith.mulf %151, %156 : vector<16x16xf32>
    %158 = arith.truncf %157 : vector<16x16xf32> to vector<16x16xbf16>
    %159 = vector.extract_strided_slice %158 {offsets = [8, 0], sizes = [8, 16], strides = [1, 1]} : vector<16x16xbf16> to vector<8x16xbf16>
    %c3_98 = arith.constant 3 : index
    %c0_99 = arith.constant 0 : index
    %c0_100 = arith.constant 0 : index
    %160 = vector.load %arg8[%c3_98, %c0_99, %c0_100] : memref<4x16x32xbf16, #tpu.memory_space<vmem>>, vector<1x16x32xbf16>
    %161 = vector.shape_cast %160 : vector<1x16x32xbf16> to vector<16x32xbf16>
    %cst_101 = arith.constant dense<0.000000e+00> : vector<8x32xf32>
    %162 = tpu.matmul %159, %161, %cst_101 {dimension_numbers = #tpu.dot_dimension_numbers<[1], [0], [0], [1], [0, 0, 1, 1], [], []>} : vector<8x16xbf16>, vector<16x32xbf16>, vector<8x32xf32> -> vector<8x32xf32>
    %163 = arith.addf %121, %162 : vector<8x32xf32>
    %cst_102 = arith.constant 0.000000e+00 : f32
    %164 = vector.broadcast %cst_102 : f32 to vector<8x32xf32>
    %165 = arith.maximumf %163, %164 : vector<8x32xf32>
    %166 = arith.truncf %165 : vector<8x32xf32> to vector<8x32xbf16>
    %c0_103 = arith.constant 0 : index
    %c0_104 = arith.constant 0 : index
    %167 = vector.load %arg9[%c0_103, %c0_104] : memref<32x32xbf16, #tpu.memory_space<vmem>>, vector<32x32xbf16>
    %cst_105 = arith.constant dense<0.000000e+00> : vector<8x32xf32>
    %168 = tpu.matmul %166, %167, %cst_105 {dimension_numbers = #tpu.dot_dimension_numbers<[1], [0], [0], [1], [0, 0, 1, 1], [], []>} : vector<8x32xbf16>, vector<32x32xbf16>, vector<8x32xf32> -> vector<8x32xf32>
    %c0_106 = arith.constant 0 : index
    %c0_107 = arith.constant 0 : index
    %169 = vector.load %arg10[%c0_106, %c0_107] : memref<1x32xf32, #tpu.memory_space<vmem>>, vector<1x32xf32>
    %170 = vector.broadcast %169 : vector<1x32xf32> to vector<8x32xf32>
    %171 = arith.addf %168, %170 : vector<8x32xf32>
    %cst_108 = arith.constant 0.000000e+00 : f32
    %172 = vector.broadcast %cst_108 : f32 to vector<8x32xf32>
    %173 = arith.maximumf %171, %172 : vector<8x32xf32>
    %174 = arith.truncf %173 : vector<8x32xf32> to vector<8x32xbf16>
    %c0_109 = arith.constant 0 : index
    %c0_110 = arith.constant 0 : index
    %175 = vector.load %arg11[%c0_109, %c0_110] : memref<32x128xbf16, #tpu.memory_space<vmem>>, vector<32x128xbf16>
    %cst_111 = arith.constant dense<0.000000e+00> : vector<8x128xf32>
    %176 = tpu.matmul %174, %175, %cst_111 {dimension_numbers = #tpu.dot_dimension_numbers<[1], [0], [0], [1], [0, 0, 1, 1], [], []>} : vector<8x32xbf16>, vector<32x128xbf16>, vector<8x128xf32> -> vector<8x128xf32>
    %c0_112 = arith.constant 0 : index
    %c0_113 = arith.constant 0 : index
    %177 = vector.load %arg12[%c0_112, %c0_113] : memref<1x128xf32, #tpu.memory_space<vmem>>, vector<1x128xf32>
    %178 = vector.broadcast %177 : vector<1x128xf32> to vector<8x128xf32>
    %179 = arith.addf %176, %178 : vector<8x128xf32>
    %c0_114 = arith.constant 0 : index
    %c0_115 = arith.constant 0 : index
    %c0_116 = arith.constant 0 : index
    %180 = vector.load %arg13[%c0_114, %c0_115, %c0_116] : memref<1x8x128xf32, #tpu.memory_space<vmem>>, vector<1x8x128xf32>
    %181 = vector.shape_cast %180 : vector<1x8x128xf32> to vector<8x128xf32>
    %182 = vector.shape_cast %179 : vector<8x128xf32> to vector<1x8x128xf32>
    tpu.vector_store %arg13[%c0_114, %c0_115, %c0_116], %182 {strides = array<i32>} : memref<1x8x128xf32, #tpu.memory_space<vmem>>, vector<1x8x128xf32>,
    return
  }
  func.func @transform_0(%arg0: i32) -> (i32, i32, i32) {
    %c0_i32 = arith.constant 0 : i32
    %c0_i32_0 = arith.constant 0 : i32
    %c0_i32_1 = arith.constant 0 : i32
    return %arg0, %c0_i32, %c0_i32_0 : i32, i32, i32
  }
  func.func @transform_1(%arg0: i32) -> (i32, i32) {
    %c0_i32 = arith.constant 0 : i32
    %c0_i32_0 = arith.constant 0 : i32
    %c0_i32_1 = arith.constant 0 : i32
    return %c0_i32, %c0_i32_0 : i32, i32
  }
  func.func @transform_2(%arg0: i32) -> (i32, i32, i32) {
    %c0_i32 = arith.constant 0 : i32
    %c0_i32_0 = arith.constant 0 : i32
    %c0_i32_1 = arith.constant 0 : i32
    %c0_i32_2 = arith.constant 0 : i32
    return %c0_i32, %c0_i32_0, %c0_i32_1 : i32, i32, i32
  }
  func.func @transform_3(%arg0: i32) -> (i32, i32, i32) {
    %c0_i32 = arith.constant 0 : i32
    %c0_i32_0 = arith.constant 0 : i32
    %c0_i32_1 = arith.constant 0 : i32
    %c0_i32_2 = arith.constant 0 : i32
    return %c0_i32, %c0_i32_0, %c0_i32_1 : i32, i32, i32
  }
  func.func @transform_4(%arg0: i32) -> (i32, i32, i32) {
    %c0_i32 = arith.constant 0 : i32
    %c0_i32_0 = arith.constant 0 : i32
    %c0_i32_1 = arith.constant 0 : i32
    %c0_i32_2 = arith.constant 0 : i32
    return %c0_i32, %c0_i32_0, %c0_i32_1 : i32, i32, i32
  }
  func.func @transform_5(%arg0: i32) -> (i32, i32, i32) {
    %c0_i32 = arith.constant 0 : i32
    %c0_i32_0 = arith.constant 0 : i32
    %c0_i32_1 = arith.constant 0 : i32
    %c0_i32_2 = arith.constant 0 : i32
    return %c0_i32, %c0_i32_0, %c0_i32_1 : i32, i32, i32
  }
  func.func @transform_6(%arg0: i32) -> (i32, i32, i32) {
    %c0_i32 = arith.constant 0 : i32
    %c0_i32_0 = arith.constant 0 : i32
    %c0_i32_1 = arith.constant 0 : i32
    %c0_i32_2 = arith.constant 0 : i32
    return %c0_i32, %c0_i32_0, %c0_i32_1 : i32, i32, i32
  }
  func.func @transform_7(%arg0: i32) -> (i32, i32, i32) {
    %c0_i32 = arith.constant 0 : i32
    %c0_i32_0 = arith.constant 0 : i32
    %c0_i32_1 = arith.constant 0 : i32
    %c0_i32_2 = arith.constant 0 : i32
    return %c0_i32, %c0_i32_0, %c0_i32_1 : i32, i32, i32
  }
  func.func @transform_8(%arg0: i32) -> (i32, i32) {
    %c0_i32 = arith.constant 0 : i32
    %c0_i32_0 = arith.constant 0 : i32
    %c0_i32_1 = arith.constant 0 : i32
    return %c0_i32, %c0_i32_0 : i32, i32
  }
  func.func @transform_9(%arg0: i32) -> (i32, i32) {
    %c0_i32 = arith.constant 0 : i32
    %c0_i32_0 = arith.constant 0 : i32
    %c0_i32_1 = arith.constant 0 : i32
    return %c0_i32, %c0_i32_0 : i32, i32
  }
  func.func @transform_10(%arg0: i32) -> (i32, i32) {
    %c0_i32 = arith.constant 0 : i32
    %c0_i32_0 = arith.constant 0 : i32
    %c0_i32_1 = arith.constant 0 : i32
    return %c0_i32, %c0_i32_0 : i32, i32
  }
  func.func @transform_11(%arg0: i32) -> (i32, i32) {
    %c0_i32 = arith.constant 0 : i32
    %c0_i32_0 = arith.constant 0 : i32
    %c0_i32_1 = arith.constant 0 : i32
    return %c0_i32, %c0_i32_0 : i32, i32
  }
  func.func @transform_12(%arg0: i32) -> (i32, i32, i32) {
    %c0_i32 = arith.constant 0 : i32
    %c0_i32_0 = arith.constant 0 : i32
    %c0_i32_1 = arith.constant 0 : i32
    return %arg0, %c0_i32, %c0_i32_0 : i32, i32, i32
  }
}

</mosaic_0001>

<llo_original>
// kernel: _lambda_.1
$region0: #{_lambda_.1}
  #allocation0 [shape = 'u32[]', space=smem, size = 0x4, offset = 0x4, fixed_abs, tag = 'smem constant byte address 0x4 - core index']
  #allocation1 [shape = 'u32[144,128]{1,0:T(1,128)}', space=vmem, size = 0x12000, scoped, tag = 'internal scratch']
  %s0 = inlined_call_operand.vmem [shape: bf16[2,16,32], index: 0, kind: input, shape index: {}]
  %s1 = inlined_call_operand.vmem [shape: bf16[32,16], index: 1, kind: input, shape index: {}]
  %s2 = inlined_call_operand.vmem [shape: bf16[4,16,16], index: 2, kind: input, shape index: {}]
  %s3 = inlined_call_operand.hbm [shape: bf16[4,16,16], index: 3, kind: input, shape index: {}]
  %s4 = inlined_call_operand.hbm [shape: bf16[4,16,16], index: 4, kind: input, shape index: {}]
  %s5 = inlined_call_operand.hbm [shape: bf16[4,16,16], index: 5, kind: input, shape index: {}]
  %s6 = inlined_call_operand.hbm [shape: bf16[4,16,16], index: 6, kind: input, shape index: {}]
  %s7 = inlined_call_operand.hbm [shape: bf16[4,16,32], index: 7, kind: input, shape index: {}]
  %s8 = inlined_call_operand.vmem [shape: bf16[32,32], index: 8, kind: input, shape index: {}]
  %s9 = inlined_call_operand.vmem [shape: f32[1,32], index: 9, kind: input, shape index: {}]
  %s10 = inlined_call_operand.hbm [shape: bf16[32,128], index: 10, kind: input, shape index: {}]
  %s11 = inlined_call_operand.vmem [shape: f32[1,128], index: 11, kind: input, shape index: {}]
  %s12 = inlined_call_operand.vmem [shape: f32[2,8,128], index: 12, kind: output, shape index: {}]
  %s13 = sld [smem:[#allocation0]]
  $region105: #{_lambda_.1} parent=0
    _
  %s15 = ssub.s32 1, %s13
  %s16 = scalar_select 0, %s15, %s13
  $region1: #{_lambda_.1} parent=0
    #allocation2 [shape = 'u8[16384]{0}', space=vmem, size = 0x4000, scoped, tag = 'input window, operand 3, single buffered']
    #allocation3 [shape = 's32[2]{0}', space=sflag, size = 0x8, scoped, tag = 'scoped memory for _lambda_.1']
    #allocation4 [shape = 'u8[16384]{0}', space=vmem, size = 0x4000, scoped, tag = 'input window, operand 4, single buffered']
    #allocation5 [shape = 's32[1]{0}', space=sflag, size = 0x4, scoped, tag = 'scoped memory for _lambda_.1']
    #allocation6 [shape = 'u8[16384]{0}', space=vmem, size = 0x4000, scoped, tag = 'input window, operand 5, single buffered']
    #allocation7 [shape = 'u8[16384]{0}', space=vmem, size = 0x4000, scoped, tag = 'input window, operand 6, single buffered']
    #allocation8 [shape = 's32[1]{0}', space=sflag, size = 0x4, scoped, tag = 'scoped memory for _lambda_.1']
    #allocation9 [shape = 'u8[16384]{0}', space=vmem, size = 0x4000, scoped, tag = 'input window, operand 7, single buffered']
    #allocation10 [shape = 'u8[8192]{0}', space=vmem, size = 0x2000, scoped, tag = 'input window, operand 10, single buffered']
    #allocation11 [shape = 's32[1]{0}', space=sflag, size = 0x4, scoped, tag = 'scoped memory for _lambda_.1']
    %17 = vsyncpa [#allocation3], 0
    %18 = vsyncpa [#allocation5], 0
    %19 = vsyncpa [#allocation8], 0
    %20 = vsyncpa [#allocation11], 0
    loop: start=0, step=1, limit=4
    $region2: #{_lambda_.1} parent=1 // loop_pre_header
      _
    $region3: #{_lambda_.1} parent=1 // loop_header
      %s22 = sphi 0, %s26
      %p23 = scmp.ge.s32.totalorder %s22, 4
      %s32 = sphi 0, %s34
      %s35 = sphi 0, %s32
      %s36 = sphi 0, %s35
      %s52 = sphi 0, %s36
      %s56 = sphi 0, %s56
      %s58 = sphi 0, %s56
      %s59 = sphi 0, %s58
      %s73 = sphi 0, %s59
      %s77 = sphi 0, %s77
      %s79 = sphi 0, %s77
      %s80 = sphi 0, %s79
      %s94 = sphi 0, %s80
      %s98 = sphi 0, %s98
      %s100 = sphi 0, %s98
      %s101 = sphi 0, %s100
      %s115 = sphi 0, %s101
      %s119 = sphi 0, %s119
      %s121 = sphi 0, %s119
      %s122 = sphi 0, %s121
      %s136 = sphi 0, %s122
      %s140 = sphi 0, %s140
      %s142 = sphi 0, %s140
      %s143 = sphi 0, %s142
      %s157 = sphi 0, %s143
      %s161 = sphi 0, %s161
      %s163 = sphi 0, %s161
      %s164 = sphi 0, %s163
      %s178 = sphi 0, %s164
      %s182 = sphi 0, %s182
      %s184 = sphi 0, %s182
      %s185 = sphi 0, %s184
      %s199 = sphi 0, %s185
      %s203 = sphi 0, %s203
      %s205 = sphi 0, %s203
      %s206 = sphi 0, %s205
      %s220 = sphi 0, %s206
      %s224 = sphi 0, %s224
      %s226 = sphi 0, %s224
      %s227 = sphi 0, %s226
      %s241 = sphi 0, %s227
      %s245 = sphi 0, %s245
      %s247 = sphi 0, %s245
      %s248 = sphi 0, %s247
      %s262 = sphi 0, %s248
      %s266 = sphi 0, %s266
      %s268 = sphi 0, %s266
      %s269 = sphi 0, %s268
      %s283 = sphi 0, %s269
      %s289 = sphi 0, %s291
      %s292 = sphi 0, %s289
      %s293 = sphi 0, %s292
      %s309 = sphi 0, %s293
    $region4: #{_lambda_.1} parent=1 // loop_header_branch
      %25 = sbr.rel (%p23) target = $region8
    $region5: #{_lambda_.1} parent=1 // loop_body
      %s27 = ssub.s32 %s22, 1
      %s28 = ssub.s32 %s22, 2
      %s29 = sadd.s32 %s22, 1
      %s30 = ssub.s32 %s22, %s29
      %p31 = scmp.eq.s32.totalorder %s30, 0
      %s33 = sadd.s32 %s32, 1
      %s34 = scalar_select %p31, %s32, %s33
      %p37 = pneg %p31
      %p38 = scmp.eq.s32.totalorder %s22, 1
      %p39 = por %p37, %p38
      %p40 = scmp.ne.s32.totalorder %s32, %s35
      %p41 = scmp.eq.s32.totalorder %s22, 0
      %p42 = por %p40, %p41
      %p43 = scmp.ne.s32.totalorder %s32, %s35
      %p44 = scmp.eq.s32.totalorder %s27, 1
      %p45 = por %p43, %p44
      %p46 = scmp.ne.s32.totalorder %s35, %s36
      %p47 = scmp.eq.s32.totalorder %s27, 0
      %p48 = por %p46, %p47
      %p49 = scmp.ne.s32.totalorder %s35, %s36
      %p50 = scmp.eq.s32.totalorder %s28, 1
      %p51 = por %p49, %p50
      %p53 = scmp.ne.s32.totalorder %s36, %s52
      %p54 = scmp.eq.s32.totalorder %s28, 0
      %p55 = por %p53, %p54
      %s57 = sadd.s32 %s56, 1
      %p60 = scmp.eq.s32.totalorder %s22, 1
      %p61 = scmp.ne.s32.totalorder %s56, %s58
      %p62 = scmp.eq.s32.totalorder %s22, 0
      %p63 = por %p61, %p62
      %p64 = scmp.ne.s32.totalorder %s56, %s58
      %p65 = scmp.eq.s32.totalorder %s27, 1
      %p66 = por %p64, %p65
      %p67 = scmp.ne.s32.totalorder %s58, %s59
      %p68 = scmp.eq.s32.totalorder %s27, 0
      %p69 = por %p67, %p68
      %p70 = scmp.ne.s32.totalorder %s58, %s59
      %p71 = scmp.eq.s32.totalorder %s28, 1
      %p72 = por %p70, %p71
      %p74 = scmp.ne.s32.totalorder %s59, %s73
      %p75 = scmp.eq.s32.totalorder %s28, 0
      %p76 = por %p74, %p75
      %s78 = sadd.s32 %s77, 1
      %p81 = scmp.eq.s32.totalorder %s22, 1
      %p82 = scmp.ne.s32.totalorder %s77, %s79
      %p83 = scmp.eq.s32.totalorder %s22, 0
      %p84 = por %p82, %p83
      %p85 = scmp.ne.s32.totalorder %s77, %s79
      %p86 = scmp.eq.s32.totalorder %s27, 1
      %p87 = por %p85, %p86
      %p88 = scmp.ne.s32.totalorder %s79, %s80
      %p89 = scmp.eq.s32.totalorder %s27, 0
      %p90 = por %p88, %p89
      %p91 = scmp.ne.s32.totalorder %s79, %s80
      %p92 = scmp.eq.s32.totalorder %s28, 1
      %p93 = por %p91, %p92
      %p95 = scmp.ne.s32.totalorder %s80, %s94
      %p96 = scmp.eq.s32.totalorder %s28, 0
      %p97 = por %p95, %p96
      %s99 = sadd.s32 %s98, 1
      %p102 = scmp.eq.s32.totalorder %s22, 1
      %p103 = scmp.ne.s32.totalorder %s98, %s100
      %p104 = scmp.eq.s32.totalorder %s22, 0
      %p105 = por %p103, %p104
      %p106 = scmp.ne.s32.totalorder %s98, %s100
      %p107 = scmp.eq.s32.totalorder %s27, 1
      %p108 = por %p106, %p107
      %p109 = scmp.ne.s32.totalorder %s100, %s101
      %p110 = scmp.eq.s32.totalorder %s27, 0
      %p111 = por %p109, %p110
      %p112 = scmp.ne.s32.totalorder %s100, %s101
      %p113 = scmp.eq.s32.totalorder %s28, 1
      %p114 = por %p112, %p113
      %p116 = scmp.ne.s32.totalorder %s101, %s115
      %p117 = scmp.eq.s32.totalorder %s28, 0
      %p118 = por %p116, %p117
      %s120 = sadd.s32 %s119, 1
      %p123 = scmp.eq.s32.totalorder %s22, 1
      %p124 = scmp.ne.s32.totalorder %s119, %s121
      %p125 = scmp.eq.s32.totalorder %s22, 0
      %p126 = por %p124, %p125
      %p127 = scmp.ne.s32.totalorder %s119, %s121
      %p128 = scmp.eq.s32.totalorder %s27, 1
      %p129 = por %p127, %p128
      %p130 = scmp.ne.s32.totalorder %s121, %s122
      %p131 = scmp.eq.s32.totalorder %s27, 0
      %p132 = por %p130, %p131
      %p133 = scmp.ne.s32.totalorder %s121, %s122
      %p134 = scmp.eq.s32.totalorder %s28, 1
      %p135 = por %p133, %p134
      %p137 = scmp.ne.s32.totalorder %s122, %s136
      %p138 = scmp.eq.s32.totalorder %s28, 0
      %p139 = por %p137, %p138
      %s141 = sadd.s32 %s140, 1
      %p144 = scmp.eq.s32.totalorder %s22, 1
      %p145 = scmp.ne.s32.totalorder %s140, %s142
      %p146 = scmp.eq.s32.totalorder %s22, 0
      %p147 = por %p145, %p146
      %p148 = scmp.ne.s32.totalorder %s140, %s142
      %p149 = scmp.eq.s32.totalorder %s27, 1
      %p150 = por %p148, %p149
      %p151 = scmp.ne.s32.totalorder %s142, %s143
      %p152 = scmp.eq.s32.totalorder %s27, 0
      %p153 = por %p151, %p152
      %p154 = scmp.ne.s32.totalorder %s142, %s143
      %p155 = scmp.eq.s32.totalorder %s28, 1
      %p156 = por %p154, %p155
      %p158 = scmp.ne.s32.totalorder %s143, %s157
      %p159 = scmp.eq.s32.totalorder %s28, 0
      %p160 = por %p158, %p159
      %s162 = sadd.s32 %s161, 1
      %p165 = scmp.eq.s32.totalorder %s22, 1
      %p166 = scmp.ne.s32.totalorder %s161, %s163
      %p167 = scmp.eq.s32.totalorder %s22, 0
      %p168 = por %p166, %p167
      %p169 = scmp.ne.s32.totalorder %s161, %s163
      %p170 = scmp.eq.s32.totalorder %s27, 1
      %p171 = por %p169, %p170
      %p172 = scmp.ne.s32.totalorder %s163, %s164
      %p173 = scmp.eq.s32.totalorder %s27, 0
      %p174 = por %p172, %p173
      %p175 = scmp.ne.s32.totalorder %s163, %s164
      %p176 = scmp.eq.s32.totalorder %s28, 1
      %p177 = por %p175, %p176
      %p179 = scmp.ne.s32.totalorder %s164, %s178
      %p180 = scmp.eq.s32.totalorder %s28, 0
      %p181 = por %p179, %p180
      %s183 = sadd.s32 %s182, 1
      %p186 = scmp.eq.s32.totalorder %s22, 1
      %p187 = scmp.ne.s32.totalorder %s182, %s184
      %p188 = scmp.eq.s32.totalorder %s22, 0
      %p189 = por %p187, %p188
      %p190 = scmp.ne.s32.totalorder %s182, %s184
      %p191 = scmp.eq.s32.totalorder %s27, 1
      %p192 = por %p190, %p191
      %p193 = scmp.ne.s32.totalorder %s184, %s185
      %p194 = scmp.eq.s32.totalorder %s27, 0
      %p195 = por %p193, %p194
      %p196 = scmp.ne.s32.totalorder %s184, %s185
      %p197 = scmp.eq.s32.totalorder %s28, 1
      %p198 = por %p196, %p197
      %p200 = scmp.ne.s32.totalorder %s185, %s199
      %p201 = scmp.eq.s32.totalorder %s28, 0
      %p202 = por %p200, %p201
      %s204 = sadd.s32 %s203, 1
      %p207 = scmp.eq.s32.totalorder %s22, 1
      %p208 = scmp.ne.s32.totalorder %s203, %s205
      %p209 = scmp.eq.s32.totalorder %s22, 0
      %p210 = por %p208, %p209
      %p211 = scmp.ne.s32.totalorder %s203, %s205
      %p212 = scmp.eq.s32.totalorder %s27, 1
      %p213 = por %p211, %p212
      %p214 = scmp.ne.s32.totalorder %s205, %s206
      %p215 = scmp.eq.s32.totalorder %s27, 0
      %p216 = por %p214, %p215
      %p217 = scmp.ne.s32.totalorder %s205, %s206
      %p218 = scmp.eq.s32.totalorder %s28, 1
      %p219 = por %p217, %p218
      %p221 = scmp.ne.s32.totalorder %s206, %s220
      %p222 = scmp.eq.s32.totalorder %s28, 0
      %p223 = por %p221, %p222
      %s225 = sadd.s32 %s224, 1
      %p228 = scmp.eq.s32.totalorder %s22, 1
      %p229 = scmp.ne.s32.totalorder %s224, %s226
      %p230 = scmp.eq.s32.totalorder %s22, 0
      %p231 = por %p229, %p230
      %p232 = scmp.ne.s32.totalorder %s224, %s226
      %p233 = scmp.eq.s32.totalorder %s27, 1
      %p234 = por %p232, %p233
      %p235 = scmp.ne.s32.totalorder %s226, %s227
      %p236 = scmp.eq.s32.totalorder %s27, 0
      %p237 = por %p235, %p236
      %p238 = scmp.ne.s32.totalorder %s226, %s227
      %p239 = scmp.eq.s32.totalorder %s28, 1
      %p240 = por %p238, %p239
      %p242 = scmp.ne.s32.totalorder %s227, %s241
      %p243 = scmp.eq.s32.totalorder %s28, 0
      %p244 = por %p242, %p243
      %s246 = sadd.s32 %s245, 1
      %p249 = scmp.eq.s32.totalorder %s22, 1
      %p250 = scmp.ne.s32.totalorder %s245, %s247
      %p251 = scmp.eq.s32.totalorder %s22, 0
      %p252 = por %p250, %p251
      %p253 = scmp.ne.s32.totalorder %s245, %s247
      %p254 = scmp.eq.s32.totalorder %s27, 1
      %p255 = por %p253, %p254
      %p256 = scmp.ne.s32.totalorder %s247, %s248
      %p257 = scmp.eq.s32.totalorder %s27, 0
      %p258 = por %p256, %p257
      %p259 = scmp.ne.s32.totalorder %s247, %s248
      %p260 = scmp.eq.s32.totalorder %s28, 1
      %p261 = por %p259, %p260
      %p263 = scmp.ne.s32.totalorder %s248, %s262
      %p264 = scmp.eq.s32.totalorder %s28, 0
      %p265 = por %p263, %p264
      %s267 = sadd.s32 %s266, 1
      %p270 = scmp.eq.s32.totalorder %s22, 1
      %p271 = scmp.ne.s32.totalorder %s266, %s268
      %p272 = scmp.eq.s32.totalorder %s22, 0
      %p273 = por %p271, %p272
      %p274 = scmp.ne.s32.totalorder %s266, %s268
      %p275 = scmp.eq.s32.totalorder %s27, 1
      %p276 = por %p274, %p275
      %p277 = scmp.ne.s32.totalorder %s268, %s269
      %p278 = scmp.eq.s32.totalorder %s27, 0
      %p279 = por %p277, %p278
      %p280 = scmp.ne.s32.totalorder %s268, %s269
      %p281 = scmp.eq.s32.totalorder %s28, 1
      %p282 = por %p280, %p281
      %p284 = scmp.ne.s32.totalorder %s269, %s283
      %p285 = scmp.eq.s32.totalorder %s28, 0
      %p286 = por %p284, %p285
      %s287 = ssub.s32 %s22, %s29
      %p288 = scmp.eq.s32.totalorder %s287, 0
      %s290 = sadd.s32 %s289, 1
      %s291 = scalar_select %p288, %s289, %s290
      %p294 = pneg %p288
      %p295 = scmp.eq.s32.totalorder %s22, 1
      %p296 = por %p294, %p295
      %p297 = scmp.ne.s32.totalorder %s289, %s292
      %p298 = scmp.eq.s32.totalorder %s22, 0
      %p299 = por %p297, %p298
      %p300 = scmp.ne.s32.totalorder %s289, %s292
      %p301 = scmp.eq.s32.totalorder %s27, 1
      %p302 = por %p300, %p301
      %p303 = scmp.ne.s32.totalorder %s292, %s293
      %p304 = scmp.eq.s32.totalorder %s27, 0
      %p305 = por %p303, %p304
      %p306 = scmp.ne.s32.totalorder %s292, %s293
      %p307 = scmp.eq.s32.totalorder %s28, 1
      %p308 = por %p306, %p307
      %p310 = scmp.ne.s32.totalorder %s293, %s309
      %p311 = scmp.eq.s32.totalorder %s28, 0
      %p312 = por %p310, %p311
      %p313 = scmp.le.s32.totalorder 1, %s22
      %p314 = scmp.lt.s32.totalorder %s22, 3
      %p315 = pnand %p313, %p314
      %p316 = pneg %p315
      // Predicated region
      $region9: #{_lambda_.1} parent=5 // pred_check
        _
      $region10: #{_lambda_.1} parent=5 // pred_check_branch
        %318 = sbr.rel (%p315) target = $region12
      $region11: #{_lambda_.1} parent=5 // pred_region
        %s319 = ssub.s32 %s22, 1
        // Predicated region
        $region13: #{_lambda_.1} parent=11 // pred_check
          %p320 = pneg %p69
        $region14: #{_lambda_.1} parent=11 // pred_check_branch
          %322 = sbr.rel (%p320) target = $region16
        $region15: #{_lambda_.1} parent=11 // pred_region
          _
        $region16: #{_lambda_.1} parent=11 // pred_fallthru
          _
        // Predicated region
        $region17: #{_lambda_.1} parent=11 // pred_check
          %p323 = pneg %p90
        $region18: #{_lambda_.1} parent=11 // pred_check_branch
          %325 = sbr.rel (%p323) target = $region20
        $region19: #{_lambda_.1} parent=11 // pred_region
          _
        $region20: #{_lambda_.1} parent=11 // pred_fallthru
          _
        // Predicated region
        $region21: #{_lambda_.1} parent=11 // pred_check
          %p326 = pneg %p111
        $region22: #{_lambda_.1} parent=11 // pred_check_branch
          %328 = sbr.rel (%p326) target = $region24
        $region23: #{_lambda_.1} parent=11 // pred_region
          %s330 = ssub.s32 512, 512
          %331 = vsyncadd [#allocation3], %s330
          %s332 = sshll.u32 [#allocation2], 4
          %s333 = int_to_ptr.vmem [resolvable:$true] %s332
          %338 = dma.hbm_to_vmem [thread:$0]  %s3, 512, %s333, [#allocation3], 64, 64, 4
        $region24: #{_lambda_.1} parent=11 // pred_fallthru
          _
        // Predicated region
        $region25: #{_lambda_.1} parent=11 // pred_check
          %p339 = pneg %p132
        $region26: #{_lambda_.1} parent=11 // pred_check_branch
          %341 = sbr.rel (%p339) target = $region28
        $region27: #{_lambda_.1} parent=11 // pred_region
          %s343 = ssub.s32 512, 512
          %344 = vsyncadd [#allocation5], %s343
          %s345 = sshll.u32 [#allocation4], 4
          %s346 = int_to_ptr.vmem [resolvable:$true] %s345
          %351 = dma.hbm_to_vmem [thread:$0]  %s4, 512, %s346, [#allocation5], 64, 64, 4
        $region28: #{_lambda_.1} parent=11 // pred_fallthru
          _
        // Predicated region
        $region29: #{_lambda_.1} parent=11 // pred_check
          %p352 = pneg %p153
        $region30: #{_lambda_.1} parent=11 // pred_check_branch
          %354 = sbr.rel (%p352) target = $region32
        $region31: #{_lambda_.1} parent=11 // pred_region
          %s356 = ssub.s32 512, 512
          %357 = vsyncadd [#allocation5], %s356
          %s358 = sshll.u32 [#allocation6], 4
          %s359 = int_to_ptr.vmem [resolvable:$true] %s358
          %364 = dma.hbm_to_vmem [thread:$0]  %s5, 512, %s359, [#allocation5], 64, 64, 4
        $region32: #{_lambda_.1} parent=11 // pred_fallthru
          _
        // Predicated region
        $region33: #{_lambda_.1} parent=11 // pred_check
          %p365 = pneg %p174
        $region34: #{_lambda_.1} parent=11 // pred_check_branch
          %367 = sbr.rel (%p365) target = $region36
        $region35: #{_lambda_.1} parent=11 // pred_region
          %s369 = ssub.s32 512, 512
          %370 = vsyncadd [#allocation8], %s369
          %s371 = sshll.u32 [#allocation7], 4
          %s372 = int_to_ptr.vmem [resolvable:$true] %s371
          %377 = dma.hbm_to_vmem [thread:$0]  %s6, 512, %s372, [#allocation8], 64, 64, 4
        $region36: #{_lambda_.1} parent=11 // pred_fallthru
          _
        // Predicated region
        $region37: #{_lambda_.1} parent=11 // pred_check
          %p378 = pneg %p195
        $region38: #{_lambda_.1} parent=11 // pred_check_branch
          %380 = sbr.rel (%p378) target = $region40
        $region39: #{_lambda_.1} parent=11 // pred_region
          %s382 = ssub.s32 512, 512
          %383 = vsyncadd [#allocation8], %s382
          %s384 = sshll.u32 [#allocation9], 4
          %s385 = int_to_ptr.vmem [resolvable:$true] %s384
          %390 = dma.hbm_to_vmem [thread:$0]  %s7, 512, %s385, [#allocation8], 64, 64, 4
        $region40: #{_lambda_.1} parent=11 // pred_fallthru
          _
        // Predicated region
        $region41: #{_lambda_.1} parent=11 // pred_check
          %p391 = pneg %p216
        $region42: #{_lambda_.1} parent=11 // pred_check_branch
          %393 = sbr.rel (%p391) target = $region44
        $region43: #{_lambda_.1} parent=11 // pred_region
          _
        $region44: #{_lambda_.1} parent=11 // pred_fallthru
          _
        // Predicated region
        $region45: #{_lambda_.1} parent=11 // pred_check
          %p394 = pneg %p237
        $region46: #{_lambda_.1} parent=11 // pred_check_branch
          %396 = sbr.rel (%p394) target = $region48
        $region47: #{_lambda_.1} parent=11 // pred_region
          _
        $region48: #{_lambda_.1} parent=11 // pred_fallthru
          _
        // Predicated region
        $region49: #{_lambda_.1} parent=11 // pred_check
          %p397 = pneg %p258
        $region50: #{_lambda_.1} parent=11 // pred_check_branch
          %399 = sbr.rel (%p397) target = $region52
        $region51: #{_lambda_.1} parent=11 // pred_region
          %s401 = ssub.s32 256, 256
          %402 = vsyncadd [#allocation11], %s401
          %s403 = sshll.u32 [#allocation10], 4
          %s404 = int_to_ptr.vmem [resolvable:$true] %s403
          %409 = dma.hbm_to_vmem [thread:$0]  %s10, 256, %s404, [#allocation11], 64, 64, 4
        $region52: #{_lambda_.1} parent=11 // pred_fallthru
          _
        // Predicated region
        $region53: #{_lambda_.1} parent=11 // pred_check
          %p410 = pneg %p279
        $region54: #{_lambda_.1} parent=11 // pred_check_branch
          %412 = sbr.rel (%p410) target = $region56
        $region55: #{_lambda_.1} parent=11 // pred_region
          _
        $region56: #{_lambda_.1} parent=11 // pred_fallthru
          _
      $region12: #{_lambda_.1} parent=5 // pred_fallthru
        _
      %p413 = scmp.lt.s32.totalorder %s22, 2
      // Predicated region
      $region57: #{_lambda_.1} parent=5 // pred_check
        %p414 = pneg %p413
      $region58: #{_lambda_.1} parent=5 // pred_check_branch
        %416 = sbr.rel (%p414) target = $region60
      $region59: #{_lambda_.1} parent=5 // pred_region
        // Predicated region
        $region61: #{_lambda_.1} parent=59 // pred_check
          %p417 = pneg %p42
        $region62: #{_lambda_.1} parent=59 // pred_check_branch
          %419 = sbr.rel (%p417) target = $region64
        $region63: #{_lambda_.1} parent=59 // pred_region
          %p420 = scmp.lt.s32.totalorder %s22, 1
          %s421 = scalar_select %p420, %s22, 1
          %s422 = smul.addr %s421, 2
          %s423 = smul.addr %s422, 4
          %s424 = scalar_lea.vmem %s0, %s423
        $region64: #{_lambda_.1} parent=59 // pred_fallthru
          _
      $region60: #{_lambda_.1} parent=5 // pred_fallthru
        _
      %p425 = scmp.le.s32.totalorder 1, %s22
      %p426 = scmp.lt.s32.totalorder %s22, 3
      %p427 = pnand %p425, %p426
      %p428 = pneg %p427
      // Predicated region
      $region65: #{_lambda_.1} parent=5 // pred_check
        _
      $region66: #{_lambda_.1} parent=5 // pred_check_branch
        %430 = sbr.rel (%p427) target = $region68
      $region67: #{_lambda_.1} parent=5 // pred_region
        %s431 = ssub.s32 %s22, 1
        // Predicated region
        $region69: #{_lambda_.1} parent=67 // pred_check
          %p432 = pneg %p111
        $region70: #{_lambda_.1} parent=67 // pred_check_branch
          %434 = sbr.rel (%p432) target = $region72
        $region71: #{_lambda_.1} parent=67 // pred_region
          %435 = dma.done [#allocation3], 512
        $region72: #{_lambda_.1} parent=67 // pred_fallthru
          _
        // Predicated region
        $region73: #{_lambda_.1} parent=67 // pred_check
          %p436 = pneg %p132
        $region74: #{_lambda_.1} parent=67 // pred_check_branch
          %438 = sbr.rel (%p436) target = $region76
        $region75: #{_lambda_.1} parent=67 // pred_region
          %439 = dma.done [#allocation5], 512
        $region76: #{_lambda_.1} parent=67 // pred_fallthru
          _
        // Predicated region
        $region77: #{_lambda_.1} parent=67 // pred_check
          %p440 = pneg %p153
        $region78: #{_lambda_.1} parent=67 // pred_check_branch
          %442 = sbr.rel (%p440) target = $region80
        $region79: #{_lambda_.1} parent=67 // pred_region
          %443 = dma.done [#allocation5], 512
        $region80: #{_lambda_.1} parent=67 // pred_fallthru
          _
        // Predicated region
        $region81: #{_lambda_.1} parent=67 // pred_check
          %p444 = pneg %p174
        $region82: #{_lambda_.1} parent=67 // pred_check_branch
          %446 = sbr.rel (%p444) target = $region84
        $region83: #{_lambda_.1} parent=67 // pred_region
          %447 = dma.done [#allocation8], 512
        $region84: #{_lambda_.1} parent=67 // pred_fallthru
          _
        // Predicated region
        $region85: #{_lambda_.1} parent=67 // pred_check
          %p448 = pneg %p195
        $region86: #{_lambda_.1} parent=67 // pred_check_branch
          %450 = sbr.rel (%p448) target = $region88
        $region87: #{_lambda_.1} parent=67 // pred_region
          %451 = dma.done [#allocation8], 512
        $region88: #{_lambda_.1} parent=67 // pred_fallthru
          _
        // Predicated region
        $region89: #{_lambda_.1} parent=67 // pred_check
          %p452 = pneg %p258
        $region90: #{_lambda_.1} parent=67 // pred_check_branch
          %454 = sbr.rel (%p452) target = $region92
        $region91: #{_lambda_.1} parent=67 // pred_region
          %455 = dma.done [#allocation11], 256
        $region92: #{_lambda_.1} parent=67 // pred_fallthru
          _
        %p456 = scmp.lt.s32.totalorder %s27, 1
        %s457 = scalar_select %p456, %s27, 1
        %s458 = smul.addr %s457, 2
        %s459 = smul.addr %s458, 4
        %s460 = scalar_lea.vmem %s0, %s459
        %p461 = pneg %p48
        %p462 = pneg %p45
        %p463 = pneg %p69
        %p464 = pneg %p66
        %p465 = pneg %p90
        %p466 = pneg %p87
        %p467 = pneg %p111
        %p468 = pneg %p108
        %p469 = pneg %p132
        %p470 = pneg %p129
        %p471 = pneg %p153
        %p472 = pneg %p150
        %p473 = pneg %p174
        %p474 = pneg %p171
        %p475 = pneg %p195
        %p476 = pneg %p192
        %p477 = pneg %p216
        %p478 = pneg %p213
        %p479 = pneg %p237
        %p480 = pneg %p234
        %p481 = pneg %p258
        %p482 = pneg %p255
        %p483 = pneg %p279
        %p484 = pneg %p276
        %p485 = pneg %p305
        %p486 = pneg %p302
        %p487 = scmp.lt.s32.totalorder %s27, 1
        %s488 = scalar_select %p487, %s27, 1
        %s489 = smul.addr %s488, 8
        %s490 = scalar_lea.vmem %s12, %s489
        %p491 = scmp.lt.s32.totalorder %s27, 1
        %s492 = scalar_select %p491, %s27, 1
        %s493 = smul.addr %s492, 2
        %s494 = smul.addr %s493, 4
        %s495 = scalar_lea.vmem %s0, %s494
        %p496 = scmp.lt.s32.totalorder %s27, 1
        %s497 = scalar_select %p496, %s27, 1
        %s498 = smul.addr %s497, 8
        %s499 = scalar_lea.vmem %s12, %s498
        %v501 = vld [vmem:[%s495] sm:$0xf]
        %v502 = vld [vmem:[%s495 + $0x4] sm:$0xf]
        %v503 = vld [vmem:[%s1] sm:$0xf]
        %v504 = vld [vmem:[%s1 + $0x4] sm:$0xf]
        %v505 = vld [vmem:[%s1 + $0x8] sm:$0xf]
        %v506 = vld [vmem:[%s1 + $0xc] sm:$0xf]
        %v509 = vunpack.c.l.b16 %v501
        %v510 = vunpack.c.l.b16 %v502
        %v511 = vpack.c.b16 %v510, %v509
        %v516 = vunpack.c.l.b16 %v503
        %v517 = vunpack.c.l.b16 %v504
        %v518 = vunpack.c.l.b16 %v505
        %v519 = vunpack.c.l.b16 %v506
        %v520 = vpack.c.b16 %v517, %v516
        %v521 = vpack.c.b16 %v519, %v518
        %vm524 = vcmask 261120
        %v526 = vsel %vm524, %v511, 0
        %528 = vmatprep.subr.bf16.mxu0 0
        %529 = vmatpush1.bf16.msra.mxu0 0
        %530 = vmatprep.subr.bf16.mxu0 0
        %531 = vmatpush1.bf16.msra.mxu0 0
        %532 = vmatprep.subr.bf16.mxu0 0
        %533 = vmatpush1.bf16.msra.mxu0 0
        %534 = vmatprep.subr.bf16.mxu0 0
        %535 = vmatpush1.bf16.msra.mxu0 0
        %536 = vmatprep.subr.bf16.mxu0 0
        %537 = vmatpush1.bf16.msra.mxu0 0
        %538 = vmatprep.subr.bf16.mxu0 0
        %539 = vmatpush1.bf16.msra.mxu0 0
        %540 = vmatprep.subr.bf16.mxu0 0
        %541 = vmatpush1.bf16.msra.mxu0 %v521
        %542 = vmatprep.subr.bf16.mxu0 0
        %543 = vmatpush1.bf16.msra.mxu0 %v520
        %544 = vmatprep.subr.bf16.mxu0 0
        %545 = vmatpush2.bf16.msra.mxu0 0
        %546 = vmatprep.subr.bf16.mxu0 0
        %547 = vmatpush2.bf16.msra.mxu0 0
        %548 = vmatprep.subr.bf16.mxu0 0
        %549 = vmatpush2.bf16.msra.mxu0 0
        %550 = vmatprep.subr.bf16.mxu0 0
        %551 = vmatpush2.bf16.msra.mxu0 0
        %552 = vmatprep.subr.bf16.mxu0 0
        %553 = vmatpush2.bf16.msra.mxu0 0
        %554 = vmatprep.subr.bf16.mxu0 0
        %555 = vmatpush2.bf16.msra.mxu0 0
        %556 = vmatprep.subr.bf16.mxu0 0
        %557 = vmatpush2.bf16.msra.mxu0 0
        %558 = vmatprep.subr.bf16.mxu0 0
        %559 = vmatpush2.bf16.msra.mxu0 0
        %560 = vmatprep.mubr.bf16.mxu0 0
        %561 = vmatmul.mubr.bf16.gmra.mxu0 %v526
        %v562 = vpop.f32.mrf.mxu0
        %v563 = vadd.f32 0.0, %v562
        %v564 = vpop.f32.mrf.mxu0
        %v565 = vpop.f32.mrf.mxu0
        %v566 = vadd.f32 0.0, %v565
        %v567 = vpop.f32.mrf.mxu0
        %568 = vdwg.mxu0
        %v569 = vlaneseq
        %v570 = vshrl.u32 %v569, 7
        %v571 = vadd.s32 %v570, 8
        %vm574 = vcmask 1040384
        %v575 = vrot.slane %v563, 7
        %v576 = vrot.slane %v566, 7
        %v577 = vsel %vm574, %v575, %v576
        %v580 = vsel %vm574, 0.0, %v575
        %v581 = vpack.c.bf16 %v577, %v580
        %v582 = vpack.c.bf16 %v566, %v563
        %v583 = vld [vmem:[%s2] sm:$0xf]
        %v584 = vld [vmem:[%s2 + $0x4] sm:$0xf]
        %v585 = vld [vmem:[#allocation2] sm:$0xf]
        %v586 = vld [vmem:[#allocation2 + $0x4] sm:$0xf]
        %v589 = vunpack.c.l.b16 %v585
        %v590 = vunpack.c.l.b16 %v586
        %v591 = vpack.c.b16 %v590, %v589
        %vm593 = vcmask 130048
        %v595 = vsel %vm593, %v582, 0
        %597 = vmatprep.subr.bf16.mxu0 0
        %598 = vmatpush1.bf16.msra.mxu0 0
        %599 = vmatprep.subr.bf16.mxu0 0
        %600 = vmatpush1.bf16.msra.mxu0 0
        %601 = vmatprep.subr.bf16.mxu0 0
        %602 = vmatpush1.bf16.msra.mxu0 0
        %603 = vmatprep.subr.bf16.mxu0 0
        %604 = vmatpush1.bf16.msra.mxu0 0
        %605 = vmatprep.subr.bf16.mxu0 0
        %606 = vmatpush1.bf16.msra.mxu0 0
        %607 = vmatprep.subr.bf16.mxu0 0
        %608 = vmatpush1.bf16.msra.mxu0 0
        %609 = vmatprep.subr.bf16.mxu0 0
        %610 = vmatpush1.bf16.msra.mxu0 0
        %611 = vmatprep.subr.bf16.mxu0 0
        %612 = vmatpush1.bf16.msra.mxu0 %v591
        %613 = vmatprep.subr.bf16.mxu0 0
        %614 = vmatpush2.bf16.msra.mxu0 0
        %615 = vmatprep.subr.bf16.mxu0 0
        %616 = vmatpush2.bf16.msra.mxu0 0
        %617 = vmatprep.subr.bf16.mxu0 0
        %618 = vmatpush2.bf16.msra.mxu0 0
        %619 = vmatprep.subr.bf16.mxu0 0
        %620 = vmatpush2.bf16.msra.mxu0 0
        %621 = vmatprep.subr.bf16.mxu0 0
        %622 = vmatpush2.bf16.msra.mxu0 0
        %623 = vmatprep.subr.bf16.mxu0 0
        %624 = vmatpush2.bf16.msra.mxu0 0
        %625 = vmatprep.subr.bf16.mxu0 0
        %626 = vmatpush2.bf16.msra.mxu0 0
        %627 = vmatprep.subr.bf16.mxu0 0
        %628 = vmatpush2.bf16.msra.mxu0 0
        %629 = vmatprep.mubr.bf16.mxu0 0
        %630 = vmatmul.mubr.bf16.gmra.mxu0 %v595
        %v631 = vpop.f32.mrf.mxu0
        %v632 = vadd.f32 0.0, %v631
        %v633 = vpop.f32.mrf.mxu0
        %v634 = vpop.f32.mrf.mxu0
        %v635 = vadd.f32 0.0, %v634
        %v636 = vpop.f32.mrf.mxu0
        %637 = vdwg.mxu0
        %v640 = vunpack.c.l.b16 %v583
        %v641 = vunpack.c.l.b16 %v584
        %v642 = vpack.c.b16 %v641, %v640
        %v645 = vsel %vm593, %v581, 0
        %647 = vmatprep.subr.bf16.mxu0 0
        %648 = vmatpush1.bf16.msra.mxu0 0
        %649 = vmatprep.subr.bf16.mxu0 0
        %650 = vmatpush1.bf16.msra.mxu0 0
        %651 = vmatprep.subr.bf16.mxu0 0
        %652 = vmatpush1.bf16.msra.mxu0 0
        %653 = vmatprep.subr.bf16.mxu0 0
        %654 = vmatpush1.bf16.msra.mxu0 0
        %655 = vmatprep.subr.bf16.mxu0 0
        %656 = vmatpush1.bf16.msra.mxu0 0
        %657 = vmatprep.subr.bf16.mxu0 0
        %658 = vmatpush1.bf16.msra.mxu0 0
        %659 = vmatprep.subr.bf16.mxu0 0
        %660 = vmatpush1.bf16.msra.mxu0 0
        %661 = vmatprep.subr.bf16.mxu0 0
        %662 = vmatpush1.bf16.msra.mxu0 %v642
        %663 = vmatprep.subr.bf16.mxu0 0
        %664 = vmatpush2.bf16.msra.mxu0 0
        %665 = vmatprep.subr.bf16.mxu0 0
        %666 = vmatpush2.bf16.msra.mxu0 0
        %667 = vmatprep.subr.bf16.mxu0 0
        %668 = vmatpush2.bf16.msra.mxu0 0
        %669 = vmatprep.subr.bf16.mxu0 0
        %670 = vmatpush2.bf16.msra.mxu0 0
        %671 = vmatprep.subr.bf16.mxu0 0
        %672 = vmatpush2.bf16.msra.mxu0 0
        %673 = vmatprep.subr.bf16.mxu0 0
        %674 = vmatpush2.bf16.msra.mxu0 0
        %675 = vmatprep.subr.bf16.mxu0 0
        %676 = vmatpush2.bf16.msra.mxu0 0
        %677 = vmatprep.subr.bf16.mxu0 0
        %678 = vmatpush2.bf16.msra.mxu0 0
        %679 = vmatprep.mubr.bf16.mxu0 0
        %680 = vmatmul.mubr.bf16.gmra.mxu0 %v645
        %v681 = vpop.f32.mrf.mxu0
        %v682 = vadd.f32 %v632, %v681
        %v683 = vpop.f32.mrf.mxu0
        %v684 = vpop.f32.mrf.mxu0
        %v685 = vadd.f32 %v635, %v684
        %v686 = vpop.f32.mrf.mxu0
        %687 = vdwg.mxu0
        %v688 = vld [vmem:[#allocation4] sm:$0xf]
        %v689 = vld [vmem:[#allocation4 + $0x4] sm:$0xf]
        %v690 = vld [vmem:[#allocation6] sm:$0xf]
        %v691 = vld [vmem:[#allocation6 + $0x4] sm:$0xf]
        %v694 = vunpack.c.l.b16 %v690
        %v695 = vunpack.c.l.b16 %v691
        %v696 = vpack.c.b16 %v695, %v694
        %698 = vmatprep.subr.bf16.mxu0 0
        %699 = vmatpush1.bf16.msra.mxu0 0
        %700 = vmatprep.subr.bf16.mxu0 0
        %701 = vmatpush1.bf16.msra.mxu0 0
        %702 = vmatprep.subr.bf16.mxu0 0
        %703 = vmatpush1.bf16.msra.mxu0 0
        %704 = vmatprep.subr.bf16.mxu0 0
        %705 = vmatpush1.bf16.msra.mxu0 0
        %706 = vmatprep.subr.bf16.mxu0 0
        %707 = vmatpush1.bf16.msra.mxu0 0
        %708 = vmatprep.subr.bf16.mxu0 0
        %709 = vmatpush1.bf16.msra.mxu0 0
        %710 = vmatprep.subr.bf16.mxu0 0
        %711 = vmatpush1.bf16.msra.mxu0 0
        %712 = vmatprep.subr.bf16.mxu0 0
        %713 = vmatpush1.bf16.msra.mxu0 %v696
        %714 = vmatprep.subr.bf16.mxu0 0
        %715 = vmatpush2.bf16.msra.mxu0 0
        %716 = vmatprep.subr.bf16.mxu0 0
        %717 = vmatpush2.bf16.msra.mxu0 0
        %718 = vmatprep.subr.bf16.mxu0 0
        %719 = vmatpush2.bf16.msra.mxu0 0
        %720 = vmatprep.subr.bf16.mxu0 0
        %721 = vmatpush2.bf16.msra.mxu0 0
        %722 = vmatprep.subr.bf16.mxu0 0
        %723 = vmatpush2.bf16.msra.mxu0 0
        %724 = vmatprep.subr.bf16.mxu0 0
        %725 = vmatpush2.bf16.msra.mxu0 0
        %726 = vmatprep.subr.bf16.mxu0 0
        %727 = vmatpush2.bf16.msra.mxu0 0
        %728 = vmatprep.subr.bf16.mxu0 0
        %729 = vmatpush2.bf16.msra.mxu0 0
        %730 = vmatprep.mubr.bf16.mxu0 0
        %731 = vmatmul.mubr.bf16.gmra.mxu0 %v595
        %v732 = vpop.f32.mrf.mxu0
        %v733 = vadd.f32 0.0, %v732
        %v734 = vpop.f32.mrf.mxu0
        %v735 = vpop.f32.mrf.mxu0
        %v736 = vadd.f32 0.0, %v735
        %v737 = vpop.f32.mrf.mxu0
        %738 = vdwg.mxu0
        %v741 = vunpack.c.l.b16 %v688
        %v742 = vunpack.c.l.b16 %v689
        %v743 = vpack.c.b16 %v742, %v741
        %745 = vmatprep.subr.bf16.mxu0 0
        %746 = vmatpush1.bf16.msra.mxu0 0
        %747 = vmatprep.subr.bf16.mxu0 0
        %748 = vmatpush1.bf16.msra.mxu0 0
        %749 = vmatprep.subr.bf16.mxu0 0
        %750 = vmatpush1.bf16.msra.mxu0 0
        %751 = vmatprep.subr.bf16.mxu0 0
        %752 = vmatpush1.bf16.msra.mxu0 0
        %753 = vmatprep.subr.bf16.mxu0 0
        %754 = vmatpush1.bf16.msra.mxu0 0
        %755 = vmatprep.subr.bf16.mxu0 0
        %756 = vmatpush1.bf16.msra.mxu0 0
        %757 = vmatprep.subr.bf16.mxu0 0
        %758 = vmatpush1.bf16.msra.mxu0 0
        %759 = vmatprep.subr.bf16.mxu0 0
        %760 = vmatpush1.bf16.msra.mxu0 %v743
        %761 = vmatprep.subr.bf16.mxu0 0
        %762 = vmatpush2.bf16.msra.mxu0 0
        %763 = vmatprep.subr.bf16.mxu0 0
        %764 = vmatpush2.bf16.msra.mxu0 0
        %765 = vmatprep.subr.bf16.mxu0 0
        %766 = vmatpush2.bf16.msra.mxu0 0
        %767 = vmatprep.subr.bf16.mxu0 0
        %768 = vmatpush2.bf16.msra.mxu0 0
        %769 = vmatprep.subr.bf16.mxu0 0
        %770 = vmatpush2.bf16.msra.mxu0 0
        %771 = vmatprep.subr.bf16.mxu0 0
        %772 = vmatpush2.bf16.msra.mxu0 0
        %773 = vmatprep.subr.bf16.mxu0 0
        %774 = vmatpush2.bf16.msra.mxu0 0
        %775 = vmatprep.subr.bf16.mxu0 0
        %776 = vmatpush2.bf16.msra.mxu0 0
        %777 = vmatprep.mubr.bf16.mxu0 0
        %778 = vmatmul.mubr.bf16.gmra.mxu0 %v645
        %v779 = vpop.f32.mrf.mxu0
        %v780 = vadd.f32 %v733, %v779
        %v781 = vpop.f32.mrf.mxu0
        %v782 = vpop.f32.mrf.mxu0
        %v783 = vadd.f32 %v736, %v782
        %v784 = vpop.f32.mrf.mxu0
        %785 = vdwg.mxu0
        %v786 = vtanh.pop %v682
        %v787 = vtanh.pop %v685
        %v788 = vxor.u32 %v780, 2147483648
        %v789 = vxor.u32 %v783, 2147483648
        %v790 = vmul.f32 %v788, 1.442695
        %v791 = vpow.pop %v790
        %v792 = vmul.f32 %v789, 1.442695
        %v793 = vpow.pop %v792
        %v794 = vadd.f32 %v791, 1.0
        %v795 = vadd.f32 %v793, 1.0
        %v796 = vrcp.pop %v794
        %v797 = vmul.f32 1.0, %v796
        %v798 = vrcp.pop %v795
        %v799 = vmul.f32 1.0, %v798
        %v800 = vmul.f32 %v786, %v797
        %v801 = vmul.f32 %v787, %v799
        %v802 = vpack.c.bf16 %v801, %v800
        %v803 = vld [vmem:[#allocation9] sm:$0xf]
        %v804 = vld [vmem:[#allocation9 + $0x4] sm:$0xf]
        %v805 = vld [vmem:[#allocation7] sm:$0xf]
        %v806 = vld [vmem:[#allocation7 + $0x4] sm:$0xf]
        %v809 = vunpack.c.l.b16 %v805
        %v810 = vunpack.c.l.b16 %v806
        %v811 = vpack.c.b16 %v810, %v809
        %v814 = vsel %vm593, %v802, 0
        %816 = vmatprep.subr.bf16.mxu0 0
        %817 = vmatpush1.bf16.msra.mxu0 0
        %818 = vmatprep.subr.bf16.mxu0 0
        %819 = vmatpush1.bf16.msra.mxu0 0
        %820 = vmatprep.subr.bf16.mxu0 0
        %821 = vmatpush1.bf16.msra.mxu0 0
        %822 = vmatprep.subr.bf16.mxu0 0
        %823 = vmatpush1.bf16.msra.mxu0 0
        %824 = vmatprep.subr.bf16.mxu0 0
        %825 = vmatpush1.bf16.msra.mxu0 0
        %826 = vmatprep.subr.bf16.mxu0 0
        %827 = vmatpush1.bf16.msra.mxu0 0
        %828 = vmatprep.subr.bf16.mxu0 0
        %829 = vmatpush1.bf16.msra.mxu0 0
        %830 = vmatprep.subr.bf16.mxu0 0
        %831 = vmatpush1.bf16.msra.mxu0 %v811
        %832 = vmatprep.subr.bf16.mxu0 0
        %833 = vmatpush2.bf16.msra.mxu0 0
        %834 = vmatprep.subr.bf16.mxu0 0
        %835 = vmatpush2.bf16.msra.mxu0 0
        %836 = vmatprep.subr.bf16.mxu0 0
        %837 = vmatpush2.bf16.msra.mxu0 0
        %838 = vmatprep.subr.bf16.mxu0 0
        %839 = vmatpush2.bf16.msra.mxu0 0
        %840 = vmatprep.subr.bf16.mxu0 0
        %841 = vmatpush2.bf16.msra.mxu0 0
        %842 = vmatprep.subr.bf16.mxu0 0
        %843 = vmatpush2.bf16.msra.mxu0 0
        %844 = vmatprep.subr.bf16.mxu0 0
        %845 = vmatpush2.bf16.msra.mxu0 0
        %846 = vmatprep.subr.bf16.mxu0 0
        %847 = vmatpush2.bf16.msra.mxu0 0
        %848 = vmatprep.mubr.bf16.mxu0 0
        %849 = vmatmul.mubr.bf16.gmra.mxu0 %v814
        %v850 = vpop.f32.mrf.mxu0
        %v851 = vadd.f32 %v563, %v850
        %v852 = vpop.f32.mrf.mxu0
        %v853 = vpop.f32.mrf.mxu0
        %v854 = vadd.f32 %v566, %v853
        %v855 = vpop.f32.mrf.mxu0
        %856 = vdwg.mxu0
        %vm857 = vcmp.ge.s32.totalorder %v570, 1
        %vm858 = vcmp.ge.s32.totalorder %v571, 1
        %v859 = vsel %vm857, 1, 0
        %v860 = vsel %vm858, 1, 0
        %v861 = vcvt.s32.f32 %v859
        %v862 = vcvt.s32.f32 %v860
        %v863 = vmul.f32 %v851, %v861
        %v864 = vmul.f32 %v854, %v862
        %vm867 = vcmask 1041408
        %v868 = vrot.slane %v863, 6
        %v869 = vrot.slane %v864, 6
        %v870 = vsel %vm867, %v868, %v869
        %v873 = vsel %vm867, 0.0, %v868
        %v874 = vpack.c.bf16 %v870, %v873
        %v875 = vpack.c.bf16 %v864, %v863
        %s876 = scalar_lea.vmem %s2, 8
        %v877 = vld [vmem:[%s876] sm:$0xf]
        %v878 = vld [vmem:[%s876 + $0x4] sm:$0xf]
        %s879 = scalar_lea.vmem [#allocation2], 8
        %v880 = vld [vmem:[%s879] sm:$0xf]
        %v881 = vld [vmem:[%s879 + $0x4] sm:$0xf]
        %v884 = vunpack.c.l.b16 %v880
        %v885 = vunpack.c.l.b16 %v881
        %v886 = vpack.c.b16 %v885, %v884
        %v889 = vsel %vm593, %v875, 0
        %891 = vmatprep.subr.bf16.mxu0 0
        %892 = vmatpush1.bf16.msra.mxu0 0
        %893 = vmatprep.subr.bf16.mxu0 0
        %894 = vmatpush1.bf16.msra.mxu0 0
        %895 = vmatprep.subr.bf16.mxu0 0
        %896 = vmatpush1.bf16.msra.mxu0 0
        %897 = vmatprep.subr.bf16.mxu0 0
        %898 = vmatpush1.bf16.msra.mxu0 0
        %899 = vmatprep.subr.bf16.mxu0 0
        %900 = vmatpush1.bf16.msra.mxu0 0
        %901 = vmatprep.subr.bf16.mxu0 0
        %902 = vmatpush1.bf16.msra.mxu0 0
        %903 = vmatprep.subr.bf16.mxu0 0
        %904 = vmatpush1.bf16.msra.mxu0 0
        %905 = vmatprep.subr.bf16.mxu0 0
        %906 = vmatpush1.bf16.msra.mxu0 %v886
        %907 = vmatprep.subr.bf16.mxu0 0
        %908 = vmatpush2.bf16.msra.mxu0 0
        %909 = vmatprep.subr.bf16.mxu0 0
        %910 = vmatpush2.bf16.msra.mxu0 0
        %911 = vmatprep.subr.bf16.mxu0 0
        %912 = vmatpush2.bf16.msra.mxu0 0
        %913 = vmatprep.subr.bf16.mxu0 0
        %914 = vmatpush2.bf16.msra.mxu0 0
        %915 = vmatprep.subr.bf16.mxu0 0
        %916 = vmatpush2.bf16.msra.mxu0 0
        %917 = vmatprep.subr.bf16.mxu0 0
        %918 = vmatpush2.bf16.msra.mxu0 0
        %919 = vmatprep.subr.bf16.mxu0 0
        %920 = vmatpush2.bf16.msra.mxu0 0
        %921 = vmatprep.subr.bf16.mxu0 0
        %922 = vmatpush2.bf16.msra.mxu0 0
        %923 = vmatprep.mubr.bf16.mxu0 0
        %924 = vmatmul.mubr.bf16.gmra.mxu0 %v889
        %v925 = vpop.f32.mrf.mxu0
        %v926 = vadd.f32 0.0, %v925
        %v927 = vpop.f32.mrf.mxu0
        %v928 = vpop.f32.mrf.mxu0
        %v929 = vadd.f32 0.0, %v928
        %v930 = vpop.f32.mrf.mxu0
        %931 = vdwg.mxu0
        %v934 = vunpack.c.l.b16 %v877
        %v935 = vunpack.c.l.b16 %v878
        %v936 = vpack.c.b16 %v935, %v934
        %v939 = vsel %vm593, %v874, 0
        %941 = vmatprep.subr.bf16.mxu0 0
        %942 = vmatpush1.bf16.msra.mxu0 0
        %943 = vmatprep.subr.bf16.mxu0 0
        %944 = vmatpush1.bf16.msra.mxu0 0
        %945 = vmatprep.subr.bf16.mxu0 0
        %946 = vmatpush1.bf16.msra.mxu0 0
        %947 = vmatprep.subr.bf16.mxu0 0
        %948 = vmatpush1.bf16.msra.mxu0 0
        %949 = vmatprep.subr.bf16.mxu0 0
        %950 = vmatpush1.bf16.msra.mxu0 0
        %951 = vmatprep.subr.bf16.mxu0 0
        %952 = vmatpush1.bf16.msra.mxu0 0
        %953 = vmatprep.subr.bf16.mxu0 0
        %954 = vmatpush1.bf16.msra.mxu0 0
        %955 = vmatprep.subr.bf16.mxu0 0
        %956 = vmatpush1.bf16.msra.mxu0 %v936
        %957 = vmatprep.subr.bf16.mxu0 0
        %958 = vmatpush2.bf16.msra.mxu0 0
        %959 = vmatprep.subr.bf16.mxu0 0
        %960 = vmatpush2.bf16.msra.mxu0 0
        %961 = vmatprep.subr.bf16.mxu0 0
        %962 = vmatpush2.bf16.msra.mxu0 0
        %963 = vmatprep.subr.bf16.mxu0 0
        %964 = vmatpush2.bf16.msra.mxu0 0
        %965 = vmatprep.subr.bf16.mxu0 0
        %966 = vmatpush2.bf16.msra.mxu0 0
        %967 = vmatprep.subr.bf16.mxu0 0
        %968 = vmatpush2.bf16.msra.mxu0 0
        %969 = vmatprep.subr.bf16.mxu0 0
        %970 = vmatpush2.bf16.msra.mxu0 0
        %971 = vmatprep.subr.bf16.mxu0 0
        %972 = vmatpush2.bf16.msra.mxu0 0
        %973 = vmatprep.mubr.bf16.mxu0 0
        %974 = vmatmul.mubr.bf16.gmra.mxu0 %v939
        %v975 = vpop.f32.mrf.mxu0
        %v976 = vadd.f32 %v926, %v975
        %v977 = vpop.f32.mrf.mxu0
        %v978 = vpop.f32.mrf.mxu0
        %v979 = vadd.f32 %v929, %v978
        %v980 = vpop.f32.mrf.mxu0
        %981 = vdwg.mxu0
        %s982 = scalar_lea.vmem [#allocation4], 8
        %v983 = vld [vmem:[%s982] sm:$0xf]
        %v984 = vld [vmem:[%s982 + $0x4] sm:$0xf]
        %s985 = scalar_lea.vmem [#allocation6], 8
        %v986 = vld [vmem:[%s985] sm:$0xf]
        %v987 = vld [vmem:[%s985 + $0x4] sm:$0xf]
        %v990 = vunpack.c.l.b16 %v986
        %v991 = vunpack.c.l.b16 %v987
        %v992 = vpack.c.b16 %v991, %v990
        %994 = vmatprep.subr.bf16.mxu0 0
        %995 = vmatpush1.bf16.msra.mxu0 0
        %996 = vmatprep.subr.bf16.mxu0 0
        %997 = vmatpush1.bf16.msra.mxu0 0
        %998 = vmatprep.subr.bf16.mxu0 0
        %999 = vmatpush1.bf16.msra.mxu0 0
        %1000 = vmatprep.subr.bf16.mxu0 0
        %1001 = vmatpush1.bf16.msra.mxu0 0
        %1002 = vmatprep.subr.bf16.mxu0 0
        %1003 = vmatpush1.bf16.msra.mxu0 0
        %1004 = vmatprep.subr.bf16.mxu0 0
        %1005 = vmatpush1.bf16.msra.mxu0 0
        %1006 = vmatprep.subr.bf16.mxu0 0
        %1007 = vmatpush1.bf16.msra.mxu0 0
        %1008 = vmatprep.subr.bf16.mxu0 0
        %1009 = vmatpush1.bf16.msra.mxu0 %v992
        %1010 = vmatprep.subr.bf16.mxu0 0
        %1011 = vmatpush2.bf16.msra.mxu0 0
        %1012 = vmatprep.subr.bf16.mxu0 0
        %1013 = vmatpush2.bf16.msra.mxu0 0
        %1014 = vmatprep.subr.bf16.mxu0 0
        %1015 = vmatpush2.bf16.msra.mxu0 0
        %1016 = vmatprep.subr.bf16.mxu0 0
        %1017 = vmatpush2.bf16.msra.mxu0 0
        %1018 = vmatprep.subr.bf16.mxu0 0
        %1019 = vmatpush2.bf16.msra.mxu0 0
        %1020 = vmatprep.subr.bf16.mxu0 0
        %1021 = vmatpush2.bf16.msra.mxu0 0
        %1022 = vmatprep.subr.bf16.mxu0 0
        %1023 = vmatpush2.bf16.msra.mxu0 0
        %1024 = vmatprep.subr.bf16.mxu0 0
        %1025 = vmatpush2.bf16.msra.mxu0 0
        %1026 = vmatprep.mubr.bf16.mxu0 0
        %1027 = vmatmul.mubr.bf16.gmra.mxu0 %v889
        %v1028 = vpop.f32.mrf.mxu0
        %v1029 = vadd.f32 0.0, %v1028
        %v1030 = vpop.f32.mrf.mxu0
        %v1031 = vpop.f32.mrf.mxu0
        %v1032 = vadd.f32 0.0, %v1031
        %v1033 = vpop.f32.mrf.mxu0
        %1034 = vdwg.mxu0
        %v1037 = vunpack.c.l.b16 %v983
        %v1038 = vunpack.c.l.b16 %v984
        %v1039 = vpack.c.b16 %v1038, %v1037
        %1041 = vmatprep.subr.bf16.mxu0 0
        %1042 = vmatpush1.bf16.msra.mxu0 0
        %1043 = vmatprep.subr.bf16.mxu0 0
        %1044 = vmatpush1.bf16.msra.mxu0 0
        %1045 = vmatprep.subr.bf16.mxu0 0
        %1046 = vmatpush1.bf16.msra.mxu0 0
        %1047 = vmatprep.subr.bf16.mxu0 0
        %1048 = vmatpush1.bf16.msra.mxu0 0
        %1049 = vmatprep.subr.bf16.mxu0 0
        %1050 = vmatpush1.bf16.msra.mxu0 0
        %1051 = vmatprep.subr.bf16.mxu0 0
        %1052 = vmatpush1.bf16.msra.mxu0 0
        %1053 = vmatprep.subr.bf16.mxu0 0
        %1054 = vmatpush1.bf16.msra.mxu0 0
        %1055 = vmatprep.subr.bf16.mxu0 0
        %1056 = vmatpush1.bf16.msra.mxu0 %v1039
        %1057 = vmatprep.subr.bf16.mxu0 0
        %1058 = vmatpush2.bf16.msra.mxu0 0
        %1059 = vmatprep.subr.bf16.mxu0 0
        %1060 = vmatpush2.bf16.msra.mxu0 0
        %1061 = vmatprep.subr.bf16.mxu0 0
        %1062 = vmatpush2.bf16.msra.mxu0 0
        %1063 = vmatprep.subr.bf16.mxu0 0
        %1064 = vmatpush2.bf16.msra.mxu0 0
        %1065 = vmatprep.subr.bf16.mxu0 0
        %1066 = vmatpush2.bf16.msra.mxu0 0
        %1067 = vmatprep.subr.bf16.mxu0 0
        %1068 = vmatpush2.bf16.msra.mxu0 0
        %1069 = vmatprep.subr.bf16.mxu0 0
        %1070 = vmatpush2.bf16.msra.mxu0 0
        %1071 = vmatprep.subr.bf16.mxu0 0
        %1072 = vmatpush2.bf16.msra.mxu0 0
        %1073 = vmatprep.mubr.bf16.mxu0 0
        %1074 = vmatmul.mubr.bf16.gmra.mxu0 %v939
        %v1075 = vpop.f32.mrf.mxu0
        %v1076 = vadd.f32 %v1029, %v1075
        %v1077 = vpop.f32.mrf.mxu0
        %v1078 = vpop.f32.mrf.mxu0
        %v1079 = vadd.f32 %v1032, %v1078
        %v1080 = vpop.f32.mrf.mxu0
        %1081 = vdwg.mxu0
        %v1082 = vtanh.pop %v976
        %v1083 = vtanh.pop %v979
        %v1084 = vxor.u32 %v1076, 2147483648
        %v1085 = vxor.u32 %v1079, 2147483648
        %v1086 = vmul.f32 %v1084, 1.442695
        %v1087 = vpow.pop %v1086
        %v1088 = vmul.f32 %v1085, 1.442695
        %v1089 = vpow.pop %v1088
        %v1090 = vadd.f32 %v1087, 1.0
        %v1091 = vadd.f32 %v1089, 1.0
        %v1092 = vrcp.pop %v1090
        %v1093 = vmul.f32 1.0, %v1092
        %v1094 = vrcp.pop %v1091
        %v1095 = vmul.f32 1.0, %v1094
        %v1096 = vmul.f32 %v1082, %v1093
        %v1097 = vmul.f32 %v1083, %v1095
        %v1098 = vpack.c.bf16 %v1097, %v1096
        %s1099 = scalar_lea.vmem [#allocation9], 8
        %v1100 = vld [vmem:[%s1099] sm:$0xf]
        %v1101 = vld [vmem:[%s1099 + $0x4] sm:$0xf]
        %v1103 = vrot.slane %v1098, 4
        %v1106 = vunpack.c.l.b16 %v1100
        %v1107 = vunpack.c.l.b16 %v1101
        %v1108 = vpack.c.b16 %v1107, %v1106
        %v1111 = vsel %vm593, %v1103, 0
        %1113 = vmatprep.subr.bf16.mxu0 0
        %1114 = vmatpush1.bf16.msra.mxu0 0
        %1115 = vmatprep.subr.bf16.mxu0 0
        %1116 = vmatpush1.bf16.msra.mxu0 0
        %1117 = vmatprep.subr.bf16.mxu0 0
        %1118 = vmatpush1.bf16.msra.mxu0 0
        %1119 = vmatprep.subr.bf16.mxu0 0
        %1120 = vmatpush1.bf16.msra.mxu0 0
        %1121 = vmatprep.subr.bf16.mxu0 0
        %1122 = vmatpush1.bf16.msra.mxu0 0
        %1123 = vmatprep.subr.bf16.mxu0 0
        %1124 = vmatpush1.bf16.msra.mxu0 0
        %1125 = vmatprep.subr.bf16.mxu0 0
        %1126 = vmatpush1.bf16.msra.mxu0 0
        %1127 = vmatprep.subr.bf16.mxu0 0
        %1128 = vmatpush1.bf16.msra.mxu0 %v1108
        %1129 = vmatprep.subr.bf16.mxu0 0
        %1130 = vmatpush2.bf16.msra.mxu0 0
        %1131 = vmatprep.subr.bf16.mxu0 0
        %1132 = vmatpush2.bf16.msra.mxu0 0
        %1133 = vmatprep.subr.bf16.mxu0 0
        %1134 = vmatpush2.bf16.msra.mxu0 0
        %1135 = vmatprep.subr.bf16.mxu0 0
        %1136 = vmatpush2.bf16.msra.mxu0 0
        %1137 = vmatprep.subr.bf16.mxu0 0
        %1138 = vmatpush2.bf16.msra.mxu0 0
        %1139 = vmatprep.subr.bf16.mxu0 0
        %1140 = vmatpush2.bf16.msra.mxu0 0
        %1141 = vmatprep.subr.bf16.mxu0 0
        %1142 = vmatpush2.bf16.msra.mxu0 0
        %1143 = vmatprep.subr.bf16.mxu0 0
        %1144 = vmatpush2.bf16.msra.mxu0 0
        %1145 = vmatprep.mubr.bf16.mxu0 0
        %1146 = vmatmul.mubr.bf16.gmra.mxu0 %v1111
        %v1147 = vpop.f32.mrf.mxu0
        %v1148 = vadd.f32 0.0, %v1147
        %v1149 = vpop.f32.mrf.mxu0
        %v1150 = vpop.f32.mrf.mxu0
        %v1151 = vpop.f32.mrf.mxu0
        %1152 = vdwg.mxu0
        %v1154 = vrot.slane %v802, 4
        %v1157 = vunpack.c.l.b16 %v803
        %v1158 = vunpack.c.l.b16 %v804
        %v1159 = vpack.c.b16 %v1158, %v1157
        %v1162 = vsel %vm593, %v1154, 0
        %1164 = vmatprep.subr.bf16.mxu0 0
        %1165 = vmatpush1.bf16.msra.mxu0 0
        %1166 = vmatprep.subr.bf16.mxu0 0
        %1167 = vmatpush1.bf16.msra.mxu0 0
        %1168 = vmatprep.subr.bf16.mxu0 0
        %1169 = vmatpush1.bf16.msra.mxu0 0
        %1170 = vmatprep.subr.bf16.mxu0 0
        %1171 = vmatpush1.bf16.msra.mxu0 0
        %1172 = vmatprep.subr.bf16.mxu0 0
        %1173 = vmatpush1.bf16.msra.mxu0 0
        %1174 = vmatprep.subr.bf16.mxu0 0
        %1175 = vmatpush1.bf16.msra.mxu0 0
        %1176 = vmatprep.subr.bf16.mxu0 0
        %1177 = vmatpush1.bf16.msra.mxu0 0
        %1178 = vmatprep.subr.bf16.mxu0 0
        %1179 = vmatpush1.bf16.msra.mxu0 %v1159
        %1180 = vmatprep.subr.bf16.mxu0 0
        %1181 = vmatpush2.bf16.msra.mxu0 0
        %1182 = vmatprep.subr.bf16.mxu0 0
        %1183 = vmatpush2.bf16.msra.mxu0 0
        %1184 = vmatprep.subr.bf16.mxu0 0
        %1185 = vmatpush2.bf16.msra.mxu0 0
        %1186 = vmatprep.subr.bf16.mxu0 0
        %1187 = vmatpush2.bf16.msra.mxu0 0
        %1188 = vmatprep.subr.bf16.mxu0 0
        %1189 = vmatpush2.bf16.msra.mxu0 0
        %1190 = vmatprep.subr.bf16.mxu0 0
        %1191 = vmatpush2.bf16.msra.mxu0 0
        %1192 = vmatprep.subr.bf16.mxu0 0
        %1193 = vmatpush2.bf16.msra.mxu0 0
        %1194 = vmatprep.subr.bf16.mxu0 0
        %1195 = vmatpush2.bf16.msra.mxu0 0
        %1196 = vmatprep.mubr.bf16.mxu0 0
        %1197 = vmatmul.mubr.bf16.gmra.mxu0 %v1162
        %v1198 = vpop.f32.mrf.mxu0
        %v1199 = vadd.f32 %v1148, %v1198
        %v1200 = vpop.f32.mrf.mxu0
        %v1201 = vpop.f32.mrf.mxu0
        %v1202 = vpop.f32.mrf.mxu0
        %1203 = vdwg.mxu0
        %s1204 = scalar_lea.vmem [#allocation7], 8
        %v1205 = vld [vmem:[%s1204] sm:$0xf]
        %v1206 = vld [vmem:[%s1204 + $0x4] sm:$0xf]
        %v1209 = vunpack.c.l.b16 %v1205
        %v1210 = vunpack.c.l.b16 %v1206
        %v1211 = vpack.c.b16 %v1210, %v1209
        %v1214 = vsel %vm593, %v1098, 0
        %1216 = vmatprep.subr.bf16.mxu0 0
        %1217 = vmatpush1.bf16.msra.mxu0 0
        %1218 = vmatprep.subr.bf16.mxu0 0
        %1219 = vmatpush1.bf16.msra.mxu0 0
        %1220 = vmatprep.subr.bf16.mxu0 0
        %1221 = vmatpush1.bf16.msra.mxu0 0
        %1222 = vmatprep.subr.bf16.mxu0 0
        %1223 = vmatpush1.bf16.msra.mxu0 0
        %1224 = vmatprep.subr.bf16.mxu0 0
        %1225 = vmatpush1.bf16.msra.mxu0 0
        %1226 = vmatprep.subr.bf16.mxu0 0
        %1227 = vmatpush1.bf16.msra.mxu0 0
        %1228 = vmatprep.subr.bf16.mxu0 0
        %1229 = vmatpush1.bf16.msra.mxu0 0
        %1230 = vmatprep.subr.bf16.mxu0 0
        %1231 = vmatpush1.bf16.msra.mxu0 %v1211
        %1232 = vmatprep.subr.bf16.mxu0 0
        %1233 = vmatpush2.bf16.msra.mxu0 0
        %1234 = vmatprep.subr.bf16.mxu0 0
        %1235 = vmatpush2.bf16.msra.mxu0 0
        %1236 = vmatprep.subr.bf16.mxu0 0
        %1237 = vmatpush2.bf16.msra.mxu0 0
        %1238 = vmatprep.subr.bf16.mxu0 0
        %1239 = vmatpush2.bf16.msra.mxu0 0
        %1240 = vmatprep.subr.bf16.mxu0 0
        %1241 = vmatpush2.bf16.msra.mxu0 0
        %1242 = vmatprep.subr.bf16.mxu0 0
        %1243 = vmatpush2.bf16.msra.mxu0 0
        %1244 = vmatprep.subr.bf16.mxu0 0
        %1245 = vmatpush2.bf16.msra.mxu0 0
        %1246 = vmatprep.subr.bf16.mxu0 0
        %1247 = vmatpush2.bf16.msra.mxu0 0
        %1248 = vmatprep.mubr.bf16.mxu0 0
        %1249 = vmatmul.mubr.bf16.gmra.mxu0 %v1214
        %v1250 = vpop.f32.mrf.mxu0
        %v1251 = vadd.f32 %v863, %v1250
        %v1252 = vpop.f32.mrf.mxu0
        %v1253 = vpop.f32.mrf.mxu0
        %v1254 = vadd.f32 %v864, %v1253
        %v1255 = vpop.f32.mrf.mxu0
        %1256 = vdwg.mxu0
        %vm1257 = vcmp.ge.s32.totalorder %v570, 2
        %vm1258 = vcmp.ge.s32.totalorder %v571, 2
        %v1259 = vsel %vm1257, 1, 0
        %v1260 = vsel %vm1258, 1, 0
        %v1261 = vcvt.s32.f32 %v1259
        %v1262 = vcvt.s32.f32 %v1260
        %v1263 = vmul.f32 %v1251, %v1261
        %v1264 = vmul.f32 %v1254, %v1262
        %v1267 = vrot.slane %v1263, 7
        %v1268 = vrot.slane %v1264, 7
        %v1269 = vsel %vm574, %v1267, %v1268
        %v1272 = vsel %vm574, 0.0, %v1267
        %v1273 = vpack.c.bf16 %v1269, %v1272
        %v1274 = vpack.c.bf16 %v1264, %v1263
        %s1275 = scalar_lea.vmem %s2, 16
        %v1276 = vld [vmem:[%s1275] sm:$0xf]
        %v1277 = vld [vmem:[%s1275 + $0x4] sm:$0xf]
        %s1278 = scalar_lea.vmem [#allocation2], 16
        %v1279 = vld [vmem:[%s1278] sm:$0xf]
        %v1280 = vld [vmem:[%s1278 + $0x4] sm:$0xf]
        %v1283 = vunpack.c.l.b16 %v1279
        %v1284 = vunpack.c.l.b16 %v1280
        %v1285 = vpack.c.b16 %v1284, %v1283
        %v1288 = vsel %vm593, %v1274, 0
        %1290 = vmatprep.subr.bf16.mxu0 0
        %1291 = vmatpush1.bf16.msra.mxu0 0
        %1292 = vmatprep.subr.bf16.mxu0 0
        %1293 = vmatpush1.bf16.msra.mxu0 0
        %1294 = vmatprep.subr.bf16.mxu0 0
        %1295 = vmatpush1.bf16.msra.mxu0 0
        %1296 = vmatprep.subr.bf16.mxu0 0
        %1297 = vmatpush1.bf16.msra.mxu0 0
        %1298 = vmatprep.subr.bf16.mxu0 0
        %1299 = vmatpush1.bf16.msra.mxu0 0
        %1300 = vmatprep.subr.bf16.mxu0 0
        %1301 = vmatpush1.bf16.msra.mxu0 0
        %1302 = vmatprep.subr.bf16.mxu0 0
        %1303 = vmatpush1.bf16.msra.mxu0 0
        %1304 = vmatprep.subr.bf16.mxu0 0
        %1305 = vmatpush1.bf16.msra.mxu0 %v1285
        %1306 = vmatprep.subr.bf16.mxu0 0
        %1307 = vmatpush2.bf16.msra.mxu0 0
        %1308 = vmatprep.subr.bf16.mxu0 0
        %1309 = vmatpush2.bf16.msra.mxu0 0
        %1310 = vmatprep.subr.bf16.mxu0 0
        %1311 = vmatpush2.bf16.msra.mxu0 0
        %1312 = vmatprep.subr.bf16.mxu0 0
        %1313 = vmatpush2.bf16.msra.mxu0 0
        %1314 = vmatprep.subr.bf16.mxu0 0
        %1315 = vmatpush2.bf16.msra.mxu0 0
        %1316 = vmatprep.subr.bf16.mxu0 0
        %1317 = vmatpush2.bf16.msra.mxu0 0
        %1318 = vmatprep.subr.bf16.mxu0 0
        %1319 = vmatpush2.bf16.msra.mxu0 0
        %1320 = vmatprep.subr.bf16.mxu0 0
        %1321 = vmatpush2.bf16.msra.mxu0 0
        %1322 = vmatprep.mubr.bf16.mxu0 0
        %1323 = vmatmul.mubr.bf16.gmra.mxu0 %v1288
        %v1324 = vpop.f32.mrf.mxu0
        %v1325 = vadd.f32 0.0, %v1324
        %v1326 = vpop.f32.mrf.mxu0
        %v1327 = vpop.f32.mrf.mxu0
        %v1328 = vadd.f32 0.0, %v1327
        %v1329 = vpop.f32.mrf.mxu0
        %1330 = vdwg.mxu0
        %v1333 = vunpack.c.l.b16 %v1276
        %v1334 = vunpack.c.l.b16 %v1277
        %v1335 = vpack.c.b16 %v1334, %v1333
        %v1338 = vsel %vm593, %v1273, 0
        %1340 = vmatprep.subr.bf16.mxu0 0
        %1341 = vmatpush1.bf16.msra.mxu0 0
        %1342 = vmatprep.subr.bf16.mxu0 0
        %1343 = vmatpush1.bf16.msra.mxu0 0
        %1344 = vmatprep.subr.bf16.mxu0 0
        %1345 = vmatpush1.bf16.msra.mxu0 0
        %1346 = vmatprep.subr.bf16.mxu0 0
        %1347 = vmatpush1.bf16.msra.mxu0 0
        %1348 = vmatprep.subr.bf16.mxu0 0
        %1349 = vmatpush1.bf16.msra.mxu0 0
        %1350 = vmatprep.subr.bf16.mxu0 0
        %1351 = vmatpush1.bf16.msra.mxu0 0
        %1352 = vmatprep.subr.bf16.mxu0 0
        %1353 = vmatpush1.bf16.msra.mxu0 0
        %1354 = vmatprep.subr.bf16.mxu0 0
        %1355 = vmatpush1.bf16.msra.mxu0 %v1335
        %1356 = vmatprep.subr.bf16.mxu0 0
        %1357 = vmatpush2.bf16.msra.mxu0 0
        %1358 = vmatprep.subr.bf16.mxu0 0
        %1359 = vmatpush2.bf16.msra.mxu0 0
        %1360 = vmatprep.subr.bf16.mxu0 0
        %1361 = vmatpush2.bf16.msra.mxu0 0
        %1362 = vmatprep.subr.bf16.mxu0 0
        %1363 = vmatpush2.bf16.msra.mxu0 0
        %1364 = vmatprep.subr.bf16.mxu0 0
        %1365 = vmatpush2.bf16.msra.mxu0 0
        %1366 = vmatprep.subr.bf16.mxu0 0
        %1367 = vmatpush2.bf16.msra.mxu0 0
        %1368 = vmatprep.subr.bf16.mxu0 0
        %1369 = vmatpush2.bf16.msra.mxu0 0
        %1370 = vmatprep.subr.bf16.mxu0 0
        %1371 = vmatpush2.bf16.msra.mxu0 0
        %1372 = vmatprep.mubr.bf16.mxu0 0
        %1373 = vmatmul.mubr.bf16.gmra.mxu0 %v1338
        %v1374 = vpop.f32.mrf.mxu0
        %v1375 = vadd.f32 %v1325, %v1374
        %v1376 = vpop.f32.mrf.mxu0
        %v1377 = vpop.f32.mrf.mxu0
        %v1378 = vadd.f32 %v1328, %v1377
        %v1379 = vpop.f32.mrf.mxu0
        %1380 = vdwg.mxu0
        %s1381 = scalar_lea.vmem [#allocation4], 16
        %v1382 = vld [vmem:[%s1381] sm:$0xf]
        %v1383 = vld [vmem:[%s1381 + $0x4] sm:$0xf]
        %s1384 = scalar_lea.vmem [#allocation6], 16
        %v1385 = vld [vmem:[%s1384] sm:$0xf]
        %v1386 = vld [vmem:[%s1384 + $0x4] sm:$0xf]
        %v1389 = vunpack.c.l.b16 %v1385
        %v1390 = vunpack.c.l.b16 %v1386
        %v1391 = vpack.c.b16 %v1390, %v1389
        %1393 = vmatprep.subr.bf16.mxu0 0
        %1394 = vmatpush1.bf16.msra.mxu0 0
        %1395 = vmatprep.subr.bf16.mxu0 0
        %1396 = vmatpush1.bf16.msra.mxu0 0
        %1397 = vmatprep.subr.bf16.mxu0 0
        %1398 = vmatpush1.bf16.msra.mxu0 0
        %1399 = vmatprep.subr.bf16.mxu0 0
        %1400 = vmatpush1.bf16.msra.mxu0 0
        %1401 = vmatprep.subr.bf16.mxu0 0
        %1402 = vmatpush1.bf16.msra.mxu0 0
        %1403 = vmatprep.subr.bf16.mxu0 0
        %1404 = vmatpush1.bf16.msra.mxu0 0
        %1405 = vmatprep.subr.bf16.mxu0 0
        %1406 = vmatpush1.bf16.msra.mxu0 0
        %1407 = vmatprep.subr.bf16.mxu0 0
        %1408 = vmatpush1.bf16.msra.mxu0 %v1391
        %1409 = vmatprep.subr.bf16.mxu0 0
        %1410 = vmatpush2.bf16.msra.mxu0 0
        %1411 = vmatprep.subr.bf16.mxu0 0
        %1412 = vmatpush2.bf16.msra.mxu0 0
        %1413 = vmatprep.subr.bf16.mxu0 0
        %1414 = vmatpush2.bf16.msra.mxu0 0
        %1415 = vmatprep.subr.bf16.mxu0 0
        %1416 = vmatpush2.bf16.msra.mxu0 0
        %1417 = vmatprep.subr.bf16.mxu0 0
        %1418 = vmatpush2.bf16.msra.mxu0 0
        %1419 = vmatprep.subr.bf16.mxu0 0
        %1420 = vmatpush2.bf16.msra.mxu0 0
        %1421 = vmatprep.subr.bf16.mxu0 0
        %1422 = vmatpush2.bf16.msra.mxu0 0
        %1423 = vmatprep.subr.bf16.mxu0 0
        %1424 = vmatpush2.bf16.msra.mxu0 0
        %1425 = vmatprep.mubr.bf16.mxu0 0
        %1426 = vmatmul.mubr.bf16.gmra.mxu0 %v1288
        %v1427 = vpop.f32.mrf.mxu0
        %v1428 = vadd.f32 0.0, %v1427
        %v1429 = vpop.f32.mrf.mxu0
        %v1430 = vpop.f32.mrf.mxu0
        %v1431 = vadd.f32 0.0, %v1430
        %v1432 = vpop.f32.mrf.mxu0
        %1433 = vdwg.mxu0
        %v1436 = vunpack.c.l.b16 %v1382
        %v1437 = vunpack.c.l.b16 %v1383
        %v1438 = vpack.c.b16 %v1437, %v1436
        %1440 = vmatprep.subr.bf16.mxu0 0
        %1441 = vmatpush1.bf16.msra.mxu0 0
        %1442 = vmatprep.subr.bf16.mxu0 0
        %1443 = vmatpush1.bf16.msra.mxu0 0
        %1444 = vmatprep.subr.bf16.mxu0 0
        %1445 = vmatpush1.bf16.msra.mxu0 0
        %1446 = vmatprep.subr.bf16.mxu0 0
        %1447 = vmatpush1.bf16.msra.mxu0 0
        %1448 = vmatprep.subr.bf16.mxu0 0
        %1449 = vmatpush1.bf16.msra.mxu0 0
        %1450 = vmatprep.subr.bf16.mxu0 0
        %1451 = vmatpush1.bf16.msra.mxu0 0
        %1452 = vmatprep.subr.bf16.mxu0 0
        %1453 = vmatpush1.bf16.msra.mxu0 0
        %1454 = vmatprep.subr.bf16.mxu0 0
        %1455 = vmatpush1.bf16.msra.mxu0 %v1438
        %1456 = vmatprep.subr.bf16.mxu0 0
        %1457 = vmatpush2.bf16.msra.mxu0 0
        %1458 = vmatprep.subr.bf16.mxu0 0
        %1459 = vmatpush2.bf16.msra.mxu0 0
        %1460 = vmatprep.subr.bf16.mxu0 0
        %1461 = vmatpush2.bf16.msra.mxu0 0
        %1462 = vmatprep.subr.bf16.mxu0 0
        %1463 = vmatpush2.bf16.msra.mxu0 0
        %1464 = vmatprep.subr.bf16.mxu0 0
        %1465 = vmatpush2.bf16.msra.mxu0 0
        %1466 = vmatprep.subr.bf16.mxu0 0
        %1467 = vmatpush2.bf16.msra.mxu0 0
        %1468 = vmatprep.subr.bf16.mxu0 0
        %1469 = vmatpush2.bf16.msra.mxu0 0
        %1470 = vmatprep.subr.bf16.mxu0 0
        %1471 = vmatpush2.bf16.msra.mxu0 0
        %1472 = vmatprep.mubr.bf16.mxu0 0
        %1473 = vmatmul.mubr.bf16.gmra.mxu0 %v1338
        %v1474 = vpop.f32.mrf.mxu0
        %v1475 = vadd.f32 %v1428, %v1474
        %v1476 = vpop.f32.mrf.mxu0
        %v1477 = vpop.f32.mrf.mxu0
        %v1478 = vadd.f32 %v1431, %v1477
        %v1479 = vpop.f32.mrf.mxu0
        %1480 = vdwg.mxu0
        %v1481 = vtanh.pop %v1375
        %v1482 = vtanh.pop %v1378
        %v1483 = vxor.u32 %v1475, 2147483648
        %v1484 = vxor.u32 %v1478, 2147483648
        %v1485 = vmul.f32 %v1483, 1.442695
        %v1486 = vpow.pop %v1485
        %v1487 = vmul.f32 %v1484, 1.442695
        %v1488 = vpow.pop %v1487
        %v1489 = vadd.f32 %v1486, 1.0
        %v1490 = vadd.f32 %v1488, 1.0
        %v1491 = vrcp.pop %v1489
        %v1492 = vmul.f32 1.0, %v1491
        %v1493 = vrcp.pop %v1490
        %v1494 = vmul.f32 1.0, %v1493
        %v1495 = vmul.f32 %v1481, %v1492
        %v1496 = vmul.f32 %v1482, %v1494
        %v1497 = vpack.c.bf16 %v1496, %v1495
        %s1498 = scalar_lea.vmem [#allocation9], 16
        %v1499 = vld [vmem:[%s1498] sm:$0xf]
        %v1500 = vld [vmem:[%s1498 + $0x4] sm:$0xf]
        %v1502 = vrot.slane %v1497, 4
        %v1505 = vunpack.c.l.b16 %v1499
        %v1506 = vunpack.c.l.b16 %v1500
        %v1507 = vpack.c.b16 %v1506, %v1505
        %v1510 = vsel %vm593, %v1502, 0
        %1512 = vmatprep.subr.bf16.mxu0 0
        %1513 = vmatpush1.bf16.msra.mxu0 0
        %1514 = vmatprep.subr.bf16.mxu0 0
        %1515 = vmatpush1.bf16.msra.mxu0 0
        %1516 = vmatprep.subr.bf16.mxu0 0
        %1517 = vmatpush1.bf16.msra.mxu0 0
        %1518 = vmatprep.subr.bf16.mxu0 0
        %1519 = vmatpush1.bf16.msra.mxu0 0
        %1520 = vmatprep.subr.bf16.mxu0 0
        %1521 = vmatpush1.bf16.msra.mxu0 0
        %1522 = vmatprep.subr.bf16.mxu0 0
        %1523 = vmatpush1.bf16.msra.mxu0 0
        %1524 = vmatprep.subr.bf16.mxu0 0
        %1525 = vmatpush1.bf16.msra.mxu0 0
        %1526 = vmatprep.subr.bf16.mxu0 0
        %1527 = vmatpush1.bf16.msra.mxu0 %v1507
        %1528 = vmatprep.subr.bf16.mxu0 0
        %1529 = vmatpush2.bf16.msra.mxu0 0
        %1530 = vmatprep.subr.bf16.mxu0 0
        %1531 = vmatpush2.bf16.msra.mxu0 0
        %1532 = vmatprep.subr.bf16.mxu0 0
        %1533 = vmatpush2.bf16.msra.mxu0 0
        %1534 = vmatprep.subr.bf16.mxu0 0
        %1535 = vmatpush2.bf16.msra.mxu0 0
        %1536 = vmatprep.subr.bf16.mxu0 0
        %1537 = vmatpush2.bf16.msra.mxu0 0
        %1538 = vmatprep.subr.bf16.mxu0 0
        %1539 = vmatpush2.bf16.msra.mxu0 0
        %1540 = vmatprep.subr.bf16.mxu0 0
        %1541 = vmatpush2.bf16.msra.mxu0 0
        %1542 = vmatprep.subr.bf16.mxu0 0
        %1543 = vmatpush2.bf16.msra.mxu0 0
        %1544 = vmatprep.mubr.bf16.mxu0 0
        %1545 = vmatmul.mubr.bf16.gmra.mxu0 %v1510
        %v1546 = vpop.f32.mrf.mxu0
        %v1547 = vadd.f32 0.0, %v1546
        %v1548 = vpop.f32.mrf.mxu0
        %v1549 = vpop.f32.mrf.mxu0
        %v1550 = vpop.f32.mrf.mxu0
        %1551 = vdwg.mxu0
        %v1552 = vadd.f32 %v1199, %v1547
        %s1553 = scalar_lea.vmem [#allocation7], 16
        %v1554 = vld [vmem:[%s1553] sm:$0xf]
        %v1555 = vld [vmem:[%s1553 + $0x4] sm:$0xf]
        %v1558 = vunpack.c.l.b16 %v1554
        %v1559 = vunpack.c.l.b16 %v1555
        %v1560 = vpack.c.b16 %v1559, %v1558
        %v1563 = vsel %vm593, %v1497, 0
        %1565 = vmatprep.subr.bf16.mxu0 0
        %1566 = vmatpush1.bf16.msra.mxu0 0
        %1567 = vmatprep.subr.bf16.mxu0 0
        %1568 = vmatpush1.bf16.msra.mxu0 0
        %1569 = vmatprep.subr.bf16.mxu0 0
        %1570 = vmatpush1.bf16.msra.mxu0 0
        %1571 = vmatprep.subr.bf16.mxu0 0
        %1572 = vmatpush1.bf16.msra.mxu0 0
        %1573 = vmatprep.subr.bf16.mxu0 0
        %1574 = vmatpush1.bf16.msra.mxu0 0
        %1575 = vmatprep.subr.bf16.mxu0 0
        %1576 = vmatpush1.bf16.msra.mxu0 0
        %1577 = vmatprep.subr.bf16.mxu0 0
        %1578 = vmatpush1.bf16.msra.mxu0 0
        %1579 = vmatprep.subr.bf16.mxu0 0
        %1580 = vmatpush1.bf16.msra.mxu0 %v1560
        %1581 = vmatprep.subr.bf16.mxu0 0
        %1582 = vmatpush2.bf16.msra.mxu0 0
        %1583 = vmatprep.subr.bf16.mxu0 0
        %1584 = vmatpush2.bf16.msra.mxu0 0
        %1585 = vmatprep.subr.bf16.mxu0 0
        %1586 = vmatpush2.bf16.msra.mxu0 0
        %1587 = vmatprep.subr.bf16.mxu0 0
        %1588 = vmatpush2.bf16.msra.mxu0 0
        %1589 = vmatprep.subr.bf16.mxu0 0
        %1590 = vmatpush2.bf16.msra.mxu0 0
        %1591 = vmatprep.subr.bf16.mxu0 0
        %1592 = vmatpush2.bf16.msra.mxu0 0
        %1593 = vmatprep.subr.bf16.mxu0 0
        %1594 = vmatpush2.bf16.msra.mxu0 0
        %1595 = vmatprep.subr.bf16.mxu0 0
        %1596 = vmatpush2.bf16.msra.mxu0 0
        %1597 = vmatprep.mubr.bf16.mxu0 0
        %1598 = vmatmul.mubr.bf16.gmra.mxu0 %v1563
        %v1599 = vpop.f32.mrf.mxu0
        %v1600 = vadd.f32 %v1263, %v1599
        %v1601 = vpop.f32.mrf.mxu0
        %v1602 = vpop.f32.mrf.mxu0
        %v1603 = vadd.f32 %v1264, %v1602
        %v1604 = vpop.f32.mrf.mxu0
        %1605 = vdwg.mxu0
        %vm1606 = vcmp.ge.s32.totalorder %v570, 3
        %vm1607 = vcmp.ge.s32.totalorder %v571, 3
        %v1608 = vsel %vm1606, 1, 0
        %v1609 = vsel %vm1607, 1, 0
        %v1610 = vcvt.s32.f32 %v1608
        %v1611 = vcvt.s32.f32 %v1609
        %v1612 = vmul.f32 %v1600, %v1610
        %v1613 = vmul.f32 %v1603, %v1611
        %v1616 = vrot.slane %v1612, 6
        %v1617 = vrot.slane %v1613, 6
        %v1618 = vsel %vm867, %v1616, %v1617
        %v1621 = vsel %vm867, 0.0, %v1616
        %v1622 = vpack.c.bf16 %v1618, %v1621
        %v1623 = vpack.c.bf16 %v1613, %v1612
        %s1624 = scalar_lea.vmem %s2, 24
        %v1625 = vld [vmem:[%s1624] sm:$0xf]
        %v1626 = vld [vmem:[%s1624 + $0x4] sm:$0xf]
        %s1627 = scalar_lea.vmem [#allocation2], 24
        %v1628 = vld [vmem:[%s1627] sm:$0xf]
        %v1629 = vld [vmem:[%s1627 + $0x4] sm:$0xf]
        %v1632 = vunpack.c.l.b16 %v1628
        %v1633 = vunpack.c.l.b16 %v1629
        %v1634 = vpack.c.b16 %v1633, %v1632
        %v1637 = vsel %vm593, %v1623, 0
        %1639 = vmatprep.subr.bf16.mxu0 0
        %1640 = vmatpush1.bf16.msra.mxu0 0
        %1641 = vmatprep.subr.bf16.mxu0 0
        %1642 = vmatpush1.bf16.msra.mxu0 0
        %1643 = vmatprep.subr.bf16.mxu0 0
        %1644 = vmatpush1.bf16.msra.mxu0 0
        %1645 = vmatprep.subr.bf16.mxu0 0
        %1646 = vmatpush1.bf16.msra.mxu0 0
        %1647 = vmatprep.subr.bf16.mxu0 0
        %1648 = vmatpush1.bf16.msra.mxu0 0
        %1649 = vmatprep.subr.bf16.mxu0 0
        %1650 = vmatpush1.bf16.msra.mxu0 0
        %1651 = vmatprep.subr.bf16.mxu0 0
        %1652 = vmatpush1.bf16.msra.mxu0 0
        %1653 = vmatprep.subr.bf16.mxu0 0
        %1654 = vmatpush1.bf16.msra.mxu0 %v1634
        %1655 = vmatprep.subr.bf16.mxu0 0
        %1656 = vmatpush2.bf16.msra.mxu0 0
        %1657 = vmatprep.subr.bf16.mxu0 0
        %1658 = vmatpush2.bf16.msra.mxu0 0
        %1659 = vmatprep.subr.bf16.mxu0 0
        %1660 = vmatpush2.bf16.msra.mxu0 0
        %1661 = vmatprep.subr.bf16.mxu0 0
        %1662 = vmatpush2.bf16.msra.mxu0 0
        %1663 = vmatprep.subr.bf16.mxu0 0
        %1664 = vmatpush2.bf16.msra.mxu0 0
        %1665 = vmatprep.subr.bf16.mxu0 0
        %1666 = vmatpush2.bf16.msra.mxu0 0
        %1667 = vmatprep.subr.bf16.mxu0 0
        %1668 = vmatpush2.bf16.msra.mxu0 0
        %1669 = vmatprep.subr.bf16.mxu0 0
        %1670 = vmatpush2.bf16.msra.mxu0 0
        %1671 = vmatprep.mubr.bf16.mxu0 0
        %1672 = vmatmul.mubr.bf16.gmra.mxu0 %v1637
        %v1673 = vpop.f32.mrf.mxu0
        %v1674 = vadd.f32 0.0, %v1673
        %v1675 = vpop.f32.mrf.mxu0
        %v1676 = vpop.f32.mrf.mxu0
        %v1677 = vadd.f32 0.0, %v1676
        %v1678 = vpop.f32.mrf.mxu0
        %1679 = vdwg.mxu0
        %v1682 = vunpack.c.l.b16 %v1625
        %v1683 = vunpack.c.l.b16 %v1626
        %v1684 = vpack.c.b16 %v1683, %v1682
        %v1687 = vsel %vm593, %v1622, 0
        %1689 = vmatprep.subr.bf16.mxu0 0
        %1690 = vmatpush1.bf16.msra.mxu0 0
        %1691 = vmatprep.subr.bf16.mxu0 0
        %1692 = vmatpush1.bf16.msra.mxu0 0
        %1693 = vmatprep.subr.bf16.mxu0 0
        %1694 = vmatpush1.bf16.msra.mxu0 0
        %1695 = vmatprep.subr.bf16.mxu0 0
        %1696 = vmatpush1.bf16.msra.mxu0 0
        %1697 = vmatprep.subr.bf16.mxu0 0
        %1698 = vmatpush1.bf16.msra.mxu0 0
        %1699 = vmatprep.subr.bf16.mxu0 0
        %1700 = vmatpush1.bf16.msra.mxu0 0
        %1701 = vmatprep.subr.bf16.mxu0 0
        %1702 = vmatpush1.bf16.msra.mxu0 0
        %1703 = vmatprep.subr.bf16.mxu0 0
        %1704 = vmatpush1.bf16.msra.mxu0 %v1684
        %1705 = vmatprep.subr.bf16.mxu0 0
        %1706 = vmatpush2.bf16.msra.mxu0 0
        %1707 = vmatprep.subr.bf16.mxu0 0
        %1708 = vmatpush2.bf16.msra.mxu0 0
        %1709 = vmatprep.subr.bf16.mxu0 0
        %1710 = vmatpush2.bf16.msra.mxu0 0
        %1711 = vmatprep.subr.bf16.mxu0 0
        %1712 = vmatpush2.bf16.msra.mxu0 0
        %1713 = vmatprep.subr.bf16.mxu0 0
        %1714 = vmatpush2.bf16.msra.mxu0 0
        %1715 = vmatprep.subr.bf16.mxu0 0
        %1716 = vmatpush2.bf16.msra.mxu0 0
        %1717 = vmatprep.subr.bf16.mxu0 0
        %1718 = vmatpush2.bf16.msra.mxu0 0
        %1719 = vmatprep.subr.bf16.mxu0 0
        %1720 = vmatpush2.bf16.msra.mxu0 0
        %1721 = vmatprep.mubr.bf16.mxu0 0
        %1722 = vmatmul.mubr.bf16.gmra.mxu0 %v1687
        %v1723 = vpop.f32.mrf.mxu0
        %v1724 = vadd.f32 %v1674, %v1723
        %v1725 = vpop.f32.mrf.mxu0
        %v1726 = vpop.f32.mrf.mxu0
        %v1727 = vadd.f32 %v1677, %v1726
        %v1728 = vpop.f32.mrf.mxu0
        %1729 = vdwg.mxu0
        %s1730 = scalar_lea.vmem [#allocation4], 24
        %v1731 = vld [vmem:[%s1730] sm:$0xf]
        %v1732 = vld [vmem:[%s1730 + $0x4] sm:$0xf]
        %s1733 = scalar_lea.vmem [#allocation6], 24
        %v1734 = vld [vmem:[%s1733] sm:$0xf]
        %v1735 = vld [vmem:[%s1733 + $0x4] sm:$0xf]
        %v1738 = vunpack.c.l.b16 %v1734
        %v1739 = vunpack.c.l.b16 %v1735
        %v1740 = vpack.c.b16 %v1739, %v1738
        %1742 = vmatprep.subr.bf16.mxu0 0
        %1743 = vmatpush1.bf16.msra.mxu0 0
        %1744 = vmatprep.subr.bf16.mxu0 0
        %1745 = vmatpush1.bf16.msra.mxu0 0
        %1746 = vmatprep.subr.bf16.mxu0 0
        %1747 = vmatpush1.bf16.msra.mxu0 0
        %1748 = vmatprep.subr.bf16.mxu0 0
        %1749 = vmatpush1.bf16.msra.mxu0 0
        %1750 = vmatprep.subr.bf16.mxu0 0
        %1751 = vmatpush1.bf16.msra.mxu0 0
        %1752 = vmatprep.subr.bf16.mxu0 0
        %1753 = vmatpush1.bf16.msra.mxu0 0
        %1754 = vmatprep.subr.bf16.mxu0 0
        %1755 = vmatpush1.bf16.msra.mxu0 0
        %1756 = vmatprep.subr.bf16.mxu0 0
        %1757 = vmatpush1.bf16.msra.mxu0 %v1740
        %1758 = vmatprep.subr.bf16.mxu0 0
        %1759 = vmatpush2.bf16.msra.mxu0 0
        %1760 = vmatprep.subr.bf16.mxu0 0
        %1761 = vmatpush2.bf16.msra.mxu0 0
        %1762 = vmatprep.subr.bf16.mxu0 0
        %1763 = vmatpush2.bf16.msra.mxu0 0
        %1764 = vmatprep.subr.bf16.mxu0 0
        %1765 = vmatpush2.bf16.msra.mxu0 0
        %1766 = vmatprep.subr.bf16.mxu0 0
        %1767 = vmatpush2.bf16.msra.mxu0 0
        %1768 = vmatprep.subr.bf16.mxu0 0
        %1769 = vmatpush2.bf16.msra.mxu0 0
        %1770 = vmatprep.subr.bf16.mxu0 0
        %1771 = vmatpush2.bf16.msra.mxu0 0
        %1772 = vmatprep.subr.bf16.mxu0 0
        %1773 = vmatpush2.bf16.msra.mxu0 0
        %1774 = vmatprep.mubr.bf16.mxu0 0
        %1775 = vmatmul.mubr.bf16.gmra.mxu0 %v1637
        %v1776 = vpop.f32.mrf.mxu0
        %v1777 = vadd.f32 0.0, %v1776
        %v1778 = vpop.f32.mrf.mxu0
        %v1779 = vpop.f32.mrf.mxu0
        %v1780 = vadd.f32 0.0, %v1779
        %v1781 = vpop.f32.mrf.mxu0
        %1782 = vdwg.mxu0
        %v1785 = vunpack.c.l.b16 %v1731
        %v1786 = vunpack.c.l.b16 %v1732
        %v1787 = vpack.c.b16 %v1786, %v1785
        %1789 = vmatprep.subr.bf16.mxu0 0
        %1790 = vmatpush1.bf16.msra.mxu0 0
        %1791 = vmatprep.subr.bf16.mxu0 0
        %1792 = vmatpush1.bf16.msra.mxu0 0
        %1793 = vmatprep.subr.bf16.mxu0 0
        %1794 = vmatpush1.bf16.msra.mxu0 0
        %1795 = vmatprep.subr.bf16.mxu0 0
        %1796 = vmatpush1.bf16.msra.mxu0 0
        %1797 = vmatprep.subr.bf16.mxu0 0
        %1798 = vmatpush1.bf16.msra.mxu0 0
        %1799 = vmatprep.subr.bf16.mxu0 0
        %1800 = vmatpush1.bf16.msra.mxu0 0
        %1801 = vmatprep.subr.bf16.mxu0 0
        %1802 = vmatpush1.bf16.msra.mxu0 0
        %1803 = vmatprep.subr.bf16.mxu0 0
        %1804 = vmatpush1.bf16.msra.mxu0 %v1787
        %1805 = vmatprep.subr.bf16.mxu0 0
        %1806 = vmatpush2.bf16.msra.mxu0 0
        %1807 = vmatprep.subr.bf16.mxu0 0
        %1808 = vmatpush2.bf16.msra.mxu0 0
        %1809 = vmatprep.subr.bf16.mxu0 0
        %1810 = vmatpush2.bf16.msra.mxu0 0
        %1811 = vmatprep.subr.bf16.mxu0 0
        %1812 = vmatpush2.bf16.msra.mxu0 0
        %1813 = vmatprep.subr.bf16.mxu0 0
        %1814 = vmatpush2.bf16.msra.mxu0 0
        %1815 = vmatprep.subr.bf16.mxu0 0
        %1816 = vmatpush2.bf16.msra.mxu0 0
        %1817 = vmatprep.subr.bf16.mxu0 0
        %1818 = vmatpush2.bf16.msra.mxu0 0
        %1819 = vmatprep.subr.bf16.mxu0 0
        %1820 = vmatpush2.bf16.msra.mxu0 0
        %1821 = vmatprep.mubr.bf16.mxu0 0
        %1822 = vmatmul.mubr.bf16.gmra.mxu0 %v1687
        %v1823 = vpop.f32.mrf.mxu0
        %v1824 = vadd.f32 %v1777, %v1823
        %v1825 = vpop.f32.mrf.mxu0
        %v1826 = vpop.f32.mrf.mxu0
        %v1827 = vadd.f32 %v1780, %v1826
        %v1828 = vpop.f32.mrf.mxu0
        %1829 = vdwg.mxu0
        %v1830 = vtanh.pop %v1724
        %v1831 = vtanh.pop %v1727
        %v1832 = vxor.u32 %v1824, 2147483648
        %v1833 = vxor.u32 %v1827, 2147483648
        %v1834 = vmul.f32 %v1832, 1.442695
        %v1835 = vpow.pop %v1834
        %v1836 = vmul.f32 %v1833, 1.442695
        %v1837 = vpow.pop %v1836
        %v1838 = vadd.f32 %v1835, 1.0
        %v1839 = vadd.f32 %v1837, 1.0
        %v1840 = vrcp.pop %v1838
        %v1841 = vmul.f32 1.0, %v1840
        %v1842 = vrcp.pop %v1839
        %v1843 = vmul.f32 1.0, %v1842
        %v1844 = vmul.f32 %v1830, %v1841
        %v1845 = vmul.f32 %v1831, %v1843
        %v1846 = vpack.c.bf16 %v1845, %v1844
        %s1847 = scalar_lea.vmem [#allocation9], 24
        %v1848 = vld [vmem:[%s1847] sm:$0xf]
        %v1849 = vld [vmem:[%s1847 + $0x4] sm:$0xf]
        %v1851 = vrot.slane %v1846, 4
        %v1854 = vunpack.c.l.b16 %v1848
        %v1855 = vunpack.c.l.b16 %v1849
        %v1856 = vpack.c.b16 %v1855, %v1854
        %v1859 = vsel %vm593, %v1851, 0
        %1861 = vmatprep.subr.bf16.mxu0 0
        %1862 = vmatpush1.bf16.msra.mxu0 0
        %1863 = vmatprep.subr.bf16.mxu0 0
        %1864 = vmatpush1.bf16.msra.mxu0 0
        %1865 = vmatprep.subr.bf16.mxu0 0
        %1866 = vmatpush1.bf16.msra.mxu0 0
        %1867 = vmatprep.subr.bf16.mxu0 0
        %1868 = vmatpush1.bf16.msra.mxu0 0
        %1869 = vmatprep.subr.bf16.mxu0 0
        %1870 = vmatpush1.bf16.msra.mxu0 0
        %1871 = vmatprep.subr.bf16.mxu0 0
        %1872 = vmatpush1.bf16.msra.mxu0 0
        %1873 = vmatprep.subr.bf16.mxu0 0
        %1874 = vmatpush1.bf16.msra.mxu0 0
        %1875 = vmatprep.subr.bf16.mxu0 0
        %1876 = vmatpush1.bf16.msra.mxu0 %v1856
        %1877 = vmatprep.subr.bf16.mxu0 0
        %1878 = vmatpush2.bf16.msra.mxu0 0
        %1879 = vmatprep.subr.bf16.mxu0 0
        %1880 = vmatpush2.bf16.msra.mxu0 0
        %1881 = vmatprep.subr.bf16.mxu0 0
        %1882 = vmatpush2.bf16.msra.mxu0 0
        %1883 = vmatprep.subr.bf16.mxu0 0
        %1884 = vmatpush2.bf16.msra.mxu0 0
        %1885 = vmatprep.subr.bf16.mxu0 0
        %1886 = vmatpush2.bf16.msra.mxu0 0
        %1887 = vmatprep.subr.bf16.mxu0 0
        %1888 = vmatpush2.bf16.msra.mxu0 0
        %1889 = vmatprep.subr.bf16.mxu0 0
        %1890 = vmatpush2.bf16.msra.mxu0 0
        %1891 = vmatprep.subr.bf16.mxu0 0
        %1892 = vmatpush2.bf16.msra.mxu0 0
        %1893 = vmatprep.mubr.bf16.mxu0 0
        %1894 = vmatmul.mubr.bf16.gmra.mxu0 %v1859
        %v1895 = vpop.f32.mrf.mxu0
        %v1896 = vadd.f32 0.0, %v1895
        %v1897 = vpop.f32.mrf.mxu0
        %v1898 = vpop.f32.mrf.mxu0
        %v1899 = vpop.f32.mrf.mxu0
        %1900 = vdwg.mxu0
        %v1901 = vadd.f32 %v1552, %v1896
        %v1902 = vmax.f32 %v1901, 0.0
        %v1903 = vpack.c.bf16 %v1902, %v1902
        %v1904 = vld [vmem:[%s8] sm:$0xf]
        %v1905 = vld [vmem:[%s8 + $0x4] sm:$0xf]
        %v1906 = vld [vmem:[%s8 + $0x8] sm:$0xf]
        %v1907 = vld [vmem:[%s8 + $0xc] sm:$0xf]
        %v1908 = vld [vmem:[%s9] sm:$0x1]
        %v1910 = vlaneseq
        %v1911 = vshrl.u32 %v1910, 7
        %v1912 = vsub.s32 0, %v1911
        %v1913 = vrot.slane %v1908, %v1912
        %v1919 = vunpack.c.l.b16 %v1904
        %v1920 = vunpack.c.l.b16 %v1905
        %v1921 = vunpack.c.l.b16 %v1906
        %v1922 = vunpack.c.l.b16 %v1907
        %v1923 = vpack.c.b16 %v1920, %v1919
        %v1924 = vpack.c.b16 %v1922, %v1921
        %v1928 = vsel %vm524, %v1903, 0
        %1930 = vmatprep.subr.bf16.mxu0 0
        %1931 = vmatpush1.bf16.msra.mxu0 0
        %1932 = vmatprep.subr.bf16.mxu0 0
        %1933 = vmatpush1.bf16.msra.mxu0 0
        %1934 = vmatprep.subr.bf16.mxu0 0
        %1935 = vmatpush1.bf16.msra.mxu0 0
        %1936 = vmatprep.subr.bf16.mxu0 0
        %1937 = vmatpush1.bf16.msra.mxu0 0
        %1938 = vmatprep.subr.bf16.mxu0 0
        %1939 = vmatpush1.bf16.msra.mxu0 0
        %1940 = vmatprep.subr.bf16.mxu0 0
        %1941 = vmatpush1.bf16.msra.mxu0 0
        %1942 = vmatprep.subr.bf16.mxu0 0
        %1943 = vmatpush1.bf16.msra.mxu0 %v1924
        %1944 = vmatprep.subr.bf16.mxu0 0
        %1945 = vmatpush1.bf16.msra.mxu0 %v1923
        %1946 = vmatprep.subr.bf16.mxu0 0
        %1947 = vmatpush2.bf16.msra.mxu0 0
        %1948 = vmatprep.subr.bf16.mxu0 0
        %1949 = vmatpush2.bf16.msra.mxu0 0
        %1950 = vmatprep.subr.bf16.mxu0 0
        %1951 = vmatpush2.bf16.msra.mxu0 0
        %1952 = vmatprep.subr.bf16.mxu0 0
        %1953 = vmatpush2.bf16.msra.mxu0 0
        %1954 = vmatprep.subr.bf16.mxu0 0
        %1955 = vmatpush2.bf16.msra.mxu0 0
        %1956 = vmatprep.subr.bf16.mxu0 0
        %1957 = vmatpush2.bf16.msra.mxu0 0
        %1958 = vmatprep.subr.bf16.mxu0 0
        %1959 = vmatpush2.bf16.msra.mxu0 0
        %1960 = vmatprep.subr.bf16.mxu0 0
        %1961 = vmatpush2.bf16.msra.mxu0 0
        %1962 = vmatprep.mubr.bf16.mxu0 0
        %1963 = vmatmul.mubr.bf16.gmra.mxu0 %v1928
        %v1964 = vpop.f32.mrf.mxu0
        %v1965 = vadd.f32 %v1913, %v1964
        %v1966 = vpop.f32.mrf.mxu0
        %v1967 = vpop.f32.mrf.mxu0
        %v1968 = vpop.f32.mrf.mxu0
        %1969 = vdwg.mxu0
        %v1970 = vmax.f32 %v1965, 0.0
        %v1971 = vpack.c.bf16 %v1970, %v1970
        %v1972 = vld [vmem:[#allocation10] sm:$0xf]
        %v1973 = vld [vmem:[#allocation10 + $0x4] sm:$0xf]
        %v1974 = vld [vmem:[#allocation10 + $0x8] sm:$0xf]
        %v1975 = vld [vmem:[#allocation10 + $0xc] sm:$0xf]
        %v1976 = vld [vmem:[%s11] sm:$0x1]
        %v1978 = vlaneseq
        %v1979 = vshrl.u32 %v1978, 7
        %v1980 = vsub.s32 0, %v1979
        %v1981 = vrot.slane %v1976, %v1980
        %v1987 = vunpack.c.l.b16 %v1972
        %v1988 = vunpack.c.l.b16 %v1973
        %v1989 = vunpack.c.l.b16 %v1974
        %v1990 = vunpack.c.l.b16 %v1975
        %v1991 = vpack.c.b16 %v1988, %v1987
        %v1992 = vpack.c.b16 %v1990, %v1989
        %v1996 = vsel %vm524, %v1971, 0
        %1998 = vmatprep.subr.bf16.mxu0 0
        %1999 = vmatpush1.bf16.msra.mxu0 0
        %2000 = vmatprep.subr.bf16.mxu0 0
        %2001 = vmatpush1.bf16.msra.mxu0 0
        %2002 = vmatprep.subr.bf16.mxu0 0
        %2003 = vmatpush1.bf16.msra.mxu0 0
        %2004 = vmatprep.subr.bf16.mxu0 0
        %2005 = vmatpush1.bf16.msra.mxu0 0
        %2006 = vmatprep.subr.bf16.mxu0 0
        %2007 = vmatpush1.bf16.msra.mxu0 0
        %2008 = vmatprep.subr.bf16.mxu0 0
        %2009 = vmatpush1.bf16.msra.mxu0 0
        %2010 = vmatprep.subr.bf16.mxu0 0
        %2011 = vmatpush1.bf16.msra.mxu0 %v1992
        %2012 = vmatprep.subr.bf16.mxu0 0
        %2013 = vmatpush1.bf16.msra.mxu0 %v1991
        %2014 = vmatprep.subr.bf16.mxu0 0
        %2015 = vmatpush2.bf16.msra.mxu0 0
        %2016 = vmatprep.subr.bf16.mxu0 0
        %2017 = vmatpush2.bf16.msra.mxu0 0
        %2018 = vmatprep.subr.bf16.mxu0 0
        %2019 = vmatpush2.bf16.msra.mxu0 0
        %2020 = vmatprep.subr.bf16.mxu0 0
        %2021 = vmatpush2.bf16.msra.mxu0 0
        %2022 = vmatprep.subr.bf16.mxu0 0
        %2023 = vmatpush2.bf16.msra.mxu0 0
        %2024 = vmatprep.subr.bf16.mxu0 0
        %2025 = vmatpush2.bf16.msra.mxu0 0
        %2026 = vmatprep.subr.bf16.mxu0 0
        %2027 = vmatpush2.bf16.msra.mxu0 0
        %2028 = vmatprep.subr.bf16.mxu0 0
        %2029 = vmatpush2.bf16.msra.mxu0 0
        %2030 = vmatprep.mubr.bf16.mxu0 0
        %2031 = vmatmul.mubr.bf16.gmra.mxu0 %v1996
        %v2032 = vpop.f32.mrf.mxu0
        %v2033 = vadd.f32 %v1981, %v2032
        %v2034 = vpop.f32.mrf.mxu0
        %v2035 = vpop.f32.mrf.mxu0
        %v2036 = vpop.f32.mrf.mxu0
        %2037 = vdwg.mxu0
        %2038 = vst [vmem:[%s499] sm:$0xff] %v2033
        %p2039 = scmp.lt.s32.totalorder %s27, 1
        %s2040 = scalar_select %p2039, %s27, 1
        %s2041 = smul.addr %s2040, 8
        %s2042 = scalar_lea.vmem %s12, %s2041
        // Predicated region
        $region93: #{_lambda_.1} parent=67 // pred_check
          %p2043 = pneg %p302
        $region94: #{_lambda_.1} parent=67 // pred_check_branch
          %2045 = sbr.rel (%p2043) target = $region96
        $region95: #{_lambda_.1} parent=67 // pred_region
          _
        $region96: #{_lambda_.1} parent=67 // pred_fallthru
          _
      $region68: #{_lambda_.1} parent=5 // pred_fallthru
        _
      %p2046 = scmp.le.s32.totalorder 2, %s22
      // Predicated region
      $region97: #{_lambda_.1} parent=5 // pred_check
        %p2047 = pneg %p2046
      $region98: #{_lambda_.1} parent=5 // pred_check_branch
        %2049 = sbr.rel (%p2047) target = $region100
      $region99: #{_lambda_.1} parent=5 // pred_region
        %s2050 = ssub.s32 %s22, 2
        // Predicated region
        $region101: #{_lambda_.1} parent=99 // pred_check
          %p2051 = pneg %p308
        $region102: #{_lambda_.1} parent=99 // pred_check_branch
          %2053 = sbr.rel (%p2051) target = $region104
        $region103: #{_lambda_.1} parent=99 // pred_region
          %p2054 = scmp.lt.s32.totalorder %s28, 1
          %s2055 = scalar_select %p2054, %s28, 1
          %s2056 = smul.addr %s2055, 8
          %s2057 = scalar_lea.vmem %s12, %s2056
        $region104: #{_lambda_.1} parent=99 // pred_fallthru
          _
      $region100: #{_lambda_.1} parent=5 // pred_fallthru
        _
    $region6: #{_lambda_.1} parent=1 // loop_footer
      %s26 = sadd.s32 1, %s22
    $region7: #{_lambda_.1} parent=1 // loop_footer_branch
      %21 = sbr.rel target = $region3
    $region8: #{_lambda_.1} parent=1 // loop_exit
      _
    %2058 = vsyncpa [#allocation3], 1
    %s2059 = scalar_lea.sflag [#allocation3], 1
    %2060 = vsyncpa %s2059, 1
    %2061 = vsyncpa [#allocation5], 1
    %2062 = vsyncpa [#allocation8], 1
    %2063 = vsyncpa [#allocation11], 1

</llo_original>
